<compile_context>
chip_gen: v7x
topology: tpu7x:2x2x1
jax: 0.10.0
libtpu: 0.0.40
codegen_flags: <defaults>
</compile_context>

<pallas_src>
import functools

import jax
import jax.numpy as jnp
from jax import lax
from jax.experimental import pallas as pl
from jax.experimental.pallas import tpu as pltpu


def _decode_one_step_kernel(
    # data (full blocks, resident across the V grid)
    x_ref, hn_ref, cn_ref, enc_ref, penc_ref, cov_ref, mask_ref, xext_ref,
    pext_ref, y_ref,
    # LSTMCell params (bias pre-summed on host)
    wih_ref, whh_ref, blstm_ref,
    # attention params (w_enc hoisted out; b_attn folded into penc)
    wdec_ref, wcov_ref, waproj_ref,
    # p_gen params (weight split along the torch-cat dim: [h_star | h_new | x])
    wpg_hs_ref, wpg_h_ref, wpg_x_ref, bpgen_ref,
    # vocab_fc first layer (weight split along the torch-cat dim)
    w1_hs_ref, w1_h_ref, b1_ref,
    # vocab_fc second layer, tiled over V (bf16 weights, f32 bias)
    w2_ref, b2_ref,
    # outputs
    hn_out_ref, cn_out_ref, cov_out_ref, scal_out_ref,
    # scratch (persist across the V grid)
    hmid_s, pg_s, ptr_s, covl_s, m_s, l_s, ny_s,
    *, vocab_size,
):
    f32 = jnp.float32
    v = pl.program_id(0)
    n_v = pl.num_programs(0)
    tile_v = w2_ref.shape[1]
    y = y_ref[...]                                         # (B, 1) int32

    # ---------------- step 0: everything except the V-tiled vocab proj ------
    @pl.when(v == 0)
    def _prologue():
        x = x_ref[...]                                     # (B, I)
        h = hn_ref[...]                                    # (B, H)
        c = cn_ref[...]                                    # (B, H)
        B, H = h.shape

        # LSTMCell
        gates = (jnp.dot(x, wih_ref[...], preferred_element_type=f32)
                 + jnp.dot(h, whh_ref[...], preferred_element_type=f32)
                 + blstm_ref[...])                         # (B, 4H)
        i_g = jax.nn.sigmoid(gates[:, 0:H])
        f_g = jax.nn.sigmoid(gates[:, H:2 * H])
        g_g = jnp.tanh(gates[:, 2 * H:3 * H])
        o_g = jax.nn.sigmoid(gates[:, 3 * H:4 * H])
        c_new = f_g * c + i_g * g_g
        h_new = o_g * jnp.tanh(c_new)
        hn_out_ref[...] = h_new
        cn_out_ref[...] = c_new

        # Coverage attention (enc_h @ W_enc + b_attn precomputed on host)
        enc = enc_ref[...]                                 # (B, S, 2H)
        cov = cov_ref[...]                                 # (B, S)
        mask = mask_ref[...]                               # (B, S)
        proj = (penc_ref[...]
                + jnp.dot(h_new, wdec_ref[...],
                          preferred_element_type=f32)[:, None, :]
                + cov[:, :, None] * wcov_ref[...])         # (B, S, H)
        e = jnp.sum(jnp.tanh(proj) * waproj_ref[...], axis=-1)   # (B, S)
        mask_b = (mask > 0).astype(f32)
        e_m = jnp.where(mask > 0, e, f32(-1e30))
        exp_e = jnp.exp(e_m - jnp.max(e_m, axis=-1, keepdims=True)) * mask_b
        denom = jnp.maximum(jnp.sum(exp_e, axis=-1, keepdims=True), f32(1e-30))
        a = exp_e / denom                                  # (B, S)

        covl_s[...] = jnp.sum(jnp.minimum(a, cov), axis=-1, keepdims=True)
        cov_out_ref[...] = cov + a
        h_star = jnp.sum(a[:, :, None] * enc, axis=1)      # (B, 2H)

        # p_gen (rank-1 weight -> elementwise mul + reduce, no concat needed)
        pgen_lin = (jnp.sum(h_star * wpg_hs_ref[...], axis=-1, keepdims=True)
                    + jnp.sum(h_new * wpg_h_ref[...], axis=-1, keepdims=True)
                    + jnp.sum(x * wpg_x_ref[...], axis=-1, keepdims=True)
                    + bpgen_ref[...])
        p_gen = jax.nn.sigmoid(pgen_lin)                   # (B, 1)
        pg_s[...] = p_gen

        # Pointer part of p_star (duplicates accumulate == scatter_add_) plus
        # the p_extend part for y >= V.
        hit = (xext_ref[...] == y).astype(f32)             # (B, S)
        ptr = (1.0 - p_gen) * jnp.sum(a * hit, axis=-1, keepdims=True)
        pext = pext_ref[...]                               # (B, E)
        iota_e = lax.broadcasted_iota(jnp.int32, pext.shape, 1)
        ext_y = jnp.sum(pext * ((y - vocab_size) == iota_e).astype(f32),
                        axis=-1, keepdims=True)
        ptr_s[...] = ptr + ext_y

        # First vocab_fc layer (tiny) -> kept resident for all V tiles.
        hmid_s[...] = (jnp.dot(h_star, w1_hs_ref[...], preferred_element_type=f32)
                       + jnp.dot(h_new, w1_h_ref[...], preferred_element_type=f32)
                       + b1_ref[...])                      # (B, 2H)

        # Online-softmax running state.
        m_s[...] = jnp.full(m_s.shape, -1e30, f32)
        l_s[...] = jnp.zeros(l_s.shape, f32)
        ny_s[...] = jnp.zeros(ny_s.shape, f32)

    # ------------- every step: one (2H, tile_v) slab of the vocab proj ------
    hmid = hmid_s[...].astype(jnp.bfloat16)
    logits = (jnp.dot(hmid, w2_ref[...], preferred_element_type=f32)
              + b2_ref[...])                               # (B, tile_v) f32
    m_prev = m_s[...]
    m_new = jnp.maximum(m_prev, jnp.max(logits, axis=-1, keepdims=True))
    alpha = jnp.exp(m_prev - m_new)
    p_tile = jnp.exp(logits - m_new)
    col = v * tile_v + lax.broadcasted_iota(jnp.int32, logits.shape, 1)
    hit_y = (col == y).astype(f32)
    l_s[...] = alpha * l_s[...] + jnp.sum(p_tile, axis=-1, keepdims=True)
    ny_s[...] = alpha * ny_s[...] + jnp.sum(p_tile * hit_y, axis=-1, keepdims=True)
    m_s[...] = m_new

    # ------------- last step: finalize p_star, pack the two scalars ---------
    @pl.when(v == n_v - 1)
    def _epilogue():
        p_vocab_y = pg_s[...] * ny_s[...] * pl.reciprocal(l_s[...], approx=True)
        scal_out_ref[:, 0:1] = p_vocab_y + ptr_s[...]
        scal_out_ref[:, 1:2] = covl_s[...]


def init_params(key, input_size, hidden_size, vocab_size):
    """Deterministic synthetic parameters, stored as (in, out) matrices."""
    H, I, V = hidden_size, input_size, vocab_size
    ks = jax.random.split(key, 14)

    def w(k, shape, scale=0.1):
        return jax.random.normal(k, shape, jnp.float32) * scale

    return dict(
        w_ih=w(ks[0], (I, 4 * H)),          # LSTMCell weight_ih.T
        b_ih=w(ks[1], (1, 4 * H)),
        w_hh=w(ks[2], (H, 4 * H)),          # LSTMCell weight_hh.T
        b_hh=w(ks[3], (1, 4 * H)),
        w_enc=w(ks[4], (2 * H, H)),         # proj_enc_h.weight.T
        w_dec=w(ks[5], (H, H)),             # proj_dec_h.weight.T
        w_cov=w(ks[6], (1, H)),             # proj_coverage_vec.weight.T
        b_attn=jnp.zeros((1, 1), jnp.float32),
        w_aproj=w(ks[7], (1, H)),           # proj.weight (1, H), used elementwise
        w_pgen=w(ks[8], (1, 3 * H + I)),    # proj_pgen.weight (1, 3H+I)
        b_pgen=w(ks[9], (1, 1)),
        w1=w(ks[10], (3 * H, 2 * H)),       # vocab_fc[0].weight.T
        b1=w(ks[11], (1, 2 * H)),
        w2=w(ks[12], (2 * H, V)),           # vocab_fc[1].weight.T
        b2=w(ks[13], (1, V)),
    )


@functools.partial(jax.jit, static_argnames=("tile_v",))
def decode_one_step(x, hn, cn, enc_h, coverage_vec, mask, x_extend, p_extend, y,
                    params, tile_v=128):
    B, H = hn.shape
    S = enc_h.shape[1]
    V = params['w2'].shape[1]

    # ---- wrapper-side prep. In a real decoder the weight prep (bias fold,
    # splits, bf16 cast, V padding) and the encoder projection are done ONCE
    # per model / per sequence, not per step. ----
    Bp = max(8, -(-B // 8) * 8)             # sublane-aligned batch

    def pad_b(a):
        if a.shape[0] == Bp:
            return a
        return jnp.pad(a, [(0, Bp - a.shape[0])] + [(0, 0)] * (a.ndim - 1))

    x_p = pad_b(x)
    hn_p = pad_b(hn)
    cn_p = pad_b(cn)
    enc_p = pad_b(enc_h)
    cov_p = pad_b(coverage_vec)
    mask_p = pad_b(mask)
    xext_p = pad_b(x_extend.astype(jnp.int32))
    pext_p = pad_b(p_extend)
    y_p = pad_b(y.reshape(B, 1).astype(jnp.int32))

    # Hoisted encoder projection (+ attention bias folded in): constant per seq.
    penc = jnp.einsum('bsd,dh->bsh', enc_p, params['w_enc'],
                      preferred_element_type=jnp.float32) + params['b_attn']

    # Pre-summed LSTM bias.
    b_lstm = params['b_ih'] + params['b_hh']

    # Split concat-dim weights (torch cat order: [h_star | h_new | x]).
    wpg = params['w_pgen']
    wpg_hs, wpg_h, wpg_x = wpg[:, :2 * H], wpg[:, 2 * H:3 * H], wpg[:, 3 * H:]
    w1 = params['w1']
    w1_hs, w1_h = w1[:2 * H, :], w1[2 * H:, :]

    # Pad V to a multiple of tile_v; padded logits get bias -1e30 so exp()==0.
    n_v = -(-V // tile_v)
    Vp = n_v * tile_v
    w2p = jnp.pad(params['w2'], ((0, 0), (0, Vp - V))).astype(jnp.bfloat16)
    b2p = jnp.pad(params['b2'], ((0, 0), (0, Vp - V)),
                  constant_values=-1e30).astype(jnp.float32)

    inputs = [
        x_p, hn_p, cn_p, enc_p, penc, cov_p, mask_p, xext_p, pext_p, y_p,
        params['w_ih'], params['w_hh'], b_lstm,
        params['w_dec'], params['w_cov'], params['w_aproj'],
        wpg_hs, wpg_h, wpg_x, params['b_pgen'],
        w1_hs, w1_h, params['b1'],
        w2p, b2p,
    ]

    def full_spec(a):
        nd = a.ndim
        return pl.BlockSpec(a.shape, lambda v, _nd=nd: (0,) * _nd)

    in_specs = [full_spec(a) for a in inputs[:-2]]
    in_specs.append(pl.BlockSpec((2 * H, tile_v), lambda v: (0, v)))   # w2 tile
    in_specs.append(pl.BlockSpec((1, tile_v), lambda v: (0, v)))       # b2 tile

    out_shape = (
        jax.ShapeDtypeStruct((Bp, H), jnp.float32),   # hn
        jax.ShapeDtypeStruct((Bp, H), jnp.float32),   # cn
        jax.ShapeDtypeStruct((Bp, S), jnp.float32),   # coverage
        jax.ShapeDtypeStruct((Bp, 2), jnp.float32),   # [p_star, covloss]
    )
    out_specs = tuple(
        pl.BlockSpec(s.shape, lambda v, _nd=len(s.shape): (0,) * _nd)
        for s in out_shape)

    scratch_shapes = [
        pltpu.VMEM((Bp, 2 * H), jnp.float32),   # hmid
        pltpu.VMEM((Bp, 1), jnp.float32),       # p_gen
        pltpu.VMEM((Bp, 1), jnp.float32),       # pointer (+extend) part at y
        pltpu.VMEM((Bp, 1), jnp.float32),       # covloss
        pltpu.VMEM((Bp, 1), jnp.float32),       # running max
        pltpu.VMEM((Bp, 1), jnp.float32),       # running exp-sum
        pltpu.VMEM((Bp, 1), jnp.float32),       # running exp at y
    ]

    hn_o, cn_o, cov_o, scal = pl.pallas_call(
        functools.partial(_decode_one_step_kernel, vocab_size=V),
        out_shape=out_shape,
        grid=(n_v,),
        in_specs=in_specs,
        out_specs=out_specs,
        scratch_shapes=scratch_shapes,
        compiler_params=pltpu.CompilerParams(
            dimension_semantics=("arbitrary",)),   # V axis is a reduction
        # TODO(synk): for larger B add a leading 'parallel' batch grid axis
        # (megacore on v7x); at B<=8 it would only add per-step overhead.
    )(*inputs)

    return (scal[:B, 0], hn_o[:B], cn_o[:B], cov_o[:B], scal[:B, 1])


def reference_forward(x, hn, cn, enc_h, cov, mask, x_extend, p_extend, y, params):
    """Pure-JAX f32 reference mirroring the PyTorch forward (for validation)."""
    B, H = hn.shape
    gates = (x @ params['w_ih'] + params['b_ih'] + hn @ params['w_hh'] + params['b_hh'])
    i_g = jax.nn.sigmoid(gates[:, :H])
    f_g = jax.nn.sigmoid(gates[:, H:2 * H])
    g_g = jnp.tanh(gates[:, 2 * H:3 * H])
    o_g = jax.nn.sigmoid(gates[:, 3 * H:4 * H])
    c_new = f_g * cn + i_g * g_g
    h_new = o_g * jnp.tanh(c_new)

    proj_sum = (jnp.einsum('bsd,dh->bsh', enc_h, params['w_enc'])
                + (h_new @ params['w_dec'])[:, None, :]
                + cov[:, :, None] * params['w_cov'])
    e = jnp.sum(jnp.tanh(proj_sum + params['b_attn']) * params['w_aproj'], axis=-1)
    e_m = jnp.where(mask > 0, e, -1e30)
    a = jax.nn.softmax(e_m, axis=-1) * (mask > 0)
    a = a / jnp.sum(a, axis=-1, keepdims=True)
    covloss = jnp.sum(jnp.minimum(a, cov), axis=-1)
    h_star = jnp.einsum('bs,bsd->bd', a, enc_h)
    new_cov = cov + a

    pgen_in = jnp.concatenate([h_star, h_new, x], axis=-1)
    p_gen = jax.nn.sigmoid(
        jnp.sum(pgen_in * params['w_pgen'], axis=-1, keepdims=True) + params['b_pgen'])
    vin = jnp.concatenate([h_star, h_new], axis=-1)
    logits = (vin @ params['w1'] + params['b1']) @ params['w2'] + params['b2']
    p_vocab = jax.nn.softmax(logits, axis=-1) * p_gen
    p = jnp.concatenate([p_vocab, p_extend], axis=-1)
    p = p.at[jnp.arange(B)[:, None], x_extend].add(a * (1.0 - p_gen))
    p_star = p[jnp.arange(B), y]
    return p_star, h_new, c_new, new_cov, covloss


if __name__ == "__main__":
    # batch, input, hidden, vocab, seq-len, extra(OOV)-vocab
    B, I, H, V, S, E = 2, 8, 32, 200, 8, 8
    key = jax.random.PRNGKey(0)
    kp, kx, kh, kc, ke, kcov, kxe, ky = jax.random.split(key, 8)

    params = init_params(kp, I, H, V)
    x = jax.random.normal(kx, (B, I), jnp.float32)
    hn = jax.random.normal(kh, (B, H), jnp.float32)
    cn = jax.random.normal(kc, (B, H), jnp.float32)
    enc_h = jax.random.normal(ke, (B, S, 2 * H), jnp.float32)
    coverage_vec = jax.random.uniform(kcov, (B, S), jnp.float32)
    lengths = jnp.array([S, S - 3])
    mask = (jnp.arange(S)[None, :] < lengths[:, None]).astype(jnp.float32)
    x_extend = jax.random.randint(kxe, (B, S), 0, V + E)
    p_extend = jnp.zeros((B, E), jnp.float32)
    y = jax.random.randint(ky, (B,), 0, V + E)

    outs = decode_one_step(x, hn, cn, enc_h, coverage_vec, mask,
                           x_extend, p_extend, y, params)
    outs = jax.block_until_ready(outs)

    refs = reference_forward(x, hn, cn, enc_h, coverage_vec, mask,
                             x_extend, p_extend, y, params)
    names = ["p_star", "hn", "cn", "coverage", "covloss"]
    # p_star is slightly looser: the kernel streams the vocab weights in bf16.
    tols = {"p_star": (1e-3, 1e-2)}
    for name, o, r in zip(names, outs, refs):
        atol, rtol = tols.get(name, (1e-4, 1e-4))
        assert jnp.allclose(o, r, atol=atol, rtol=rtol), (name, o, r)

    print("KERNEL_OK")
</pallas_src>

<mosaic_0001>
module attributes {stable_mosaic.version = 11 : i64} {
  func.func @_decode_one_step_kernel(%arg0: i32, %arg1: memref<8x8xf32, #tpu.memory_space<vmem>>, %arg2: memref<8x32xf32, #tpu.memory_space<vmem>>, %arg3: memref<8x32xf32, #tpu.memory_space<vmem>>, %arg4: memref<8x8x64xf32, #tpu.memory_space<vmem>>, %arg5: memref<8x8x32xf32, #tpu.memory_space<vmem>>, %arg6: memref<8x8xf32, #tpu.memory_space<vmem>>, %arg7: memref<8x8xf32, #tpu.memory_space<vmem>>, %arg8: memref<8x8xi32, #tpu.memory_space<vmem>>, %arg9: memref<8x8xf32, #tpu.memory_space<vmem>>, %arg10: memref<8x1xi32, #tpu.memory_space<vmem>>, %arg11: memref<8x128xf32, #tpu.memory_space<vmem>>, %arg12: memref<32x128xf32, #tpu.memory_space<vmem>>, %arg13: memref<1x128xf32, #tpu.memory_space<vmem>>, %arg14: memref<32x32xf32, #tpu.memory_space<vmem>>, %arg15: memref<1x32xf32, #tpu.memory_space<vmem>>, %arg16: memref<1x32xf32, #tpu.memory_space<vmem>>, %arg17: memref<1x64xf32, #tpu.memory_space<vmem>>, %arg18: memref<1x32xf32, #tpu.memory_space<vmem>>, %arg19: memref<1x8xf32, #tpu.memory_space<vmem>>, %arg20: memref<1x1xf32, #tpu.memory_space<vmem>>, %arg21: memref<64x64xf32, #tpu.memory_space<vmem>>, %arg22: memref<32x64xf32, #tpu.memory_space<vmem>>, %arg23: memref<1x64xf32, #tpu.memory_space<vmem>>, %arg24: memref<64x128xbf16, #tpu.memory_space<vmem>>, %arg25: memref<1x128xf32, #tpu.memory_space<vmem>>, %arg26: memref<8x32xf32, #tpu.memory_space<vmem>>, %arg27: memref<8x32xf32, #tpu.memory_space<vmem>>, %arg28: memref<8x8xf32, #tpu.memory_space<vmem>>, %arg29: memref<8x2xf32, #tpu.memory_space<vmem>>, %arg30: memref<8x64xf32, #tpu.memory_space<vmem>>, %arg31: memref<8x1xf32, #tpu.memory_space<vmem>>, %arg32: memref<8x1xf32, #tpu.memory_space<vmem>>, %arg33: memref<8x1xf32, #tpu.memory_space<vmem>>, %arg34: memref<8x1xf32, #tpu.memory_space<vmem>>, %arg35: memref<8x1xf32, #tpu.memory_space<vmem>>, %arg36: memref<8x1xf32, #tpu.memory_space<vmem>>) attributes {dimension_semantics = [#tpu.dimension_semantics<arbitrary>], iteration_bounds = array<i64: 2>, scalar_prefetch = 0 : i64, scratch_operands = 7 : i64, tpu.core_type = #tpu.core_type<tc>, window_params = [{pipeline_mode = #tpu.pipeline_mode<synchronous>, transform_indices = @transform_0, window_bounds = array<i64: 8, 8>}, {pipeline_mode = #tpu.pipeline_mode<synchronous>, transform_indices = @transform_1, window_bounds = array<i64: 8, 32>}, {pipeline_mode = #tpu.pipeline_mode<synchronous>, transform_indices = @transform_2, window_bounds = array<i64: 8, 32>}, {pipeline_mode = #tpu.pipeline_mode<synchronous>, transform_indices = @transform_3, window_bounds = array<i64: 8, 8, 64>}, {pipeline_mode = #tpu.pipeline_mode<synchronous>, transform_indices = @transform_4, window_bounds = array<i64: 8, 8, 32>}, {pipeline_mode = #tpu.pipeline_mode<synchronous>, transform_indices = @transform_5, window_bounds = array<i64: 8, 8>}, {pipeline_mode = #tpu.pipeline_mode<synchronous>, transform_indices = @transform_6, window_bounds = array<i64: 8, 8>}, {pipeline_mode = #tpu.pipeline_mode<synchronous>, transform_indices = @transform_7, window_bounds = array<i64: 8, 8>}, {pipeline_mode = #tpu.pipeline_mode<synchronous>, transform_indices = @transform_8, window_bounds = array<i64: 8, 8>}, {pipeline_mode = #tpu.pipeline_mode<synchronous>, transform_indices = @transform_9, window_bounds = array<i64: 8, 1>}, {pipeline_mode = #tpu.pipeline_mode<synchronous>, transform_indices = @transform_10, window_bounds = array<i64: 8, 128>}, {pipeline_mode = #tpu.pipeline_mode<synchronous>, transform_indices = @transform_11, window_bounds = array<i64: 32, 128>}, {pipeline_mode = #tpu.pipeline_mode<synchronous>, transform_indices = @transform_12, window_bounds = array<i64: 1, 128>}, {pipeline_mode = #tpu.pipeline_mode<synchronous>, transform_indices = @transform_13, window_bounds = array<i64: 32, 32>}, {pipeline_mode = #tpu.pipeline_mode<synchronous>, transform_indices = @transform_14, window_bounds = array<i64: 1, 32>}, {pipeline_mode = #tpu.pipeline_mode<synchronous>, transform_indices = @transform_15, window_bounds = array<i64: 1, 32>}, {pipeline_mode = #tpu.pipeline_mode<synchronous>, transform_indices = @transform_16, window_bounds = array<i64: 1, 64>}, {pipeline_mode = #tpu.pipeline_mode<synchronous>, transform_indices = @transform_17, window_bounds = array<i64: 1, 32>}, {pipeline_mode = #tpu.pipeline_mode<synchronous>, transform_indices = @transform_18, window_bounds = array<i64: 1, 8>}, {pipeline_mode = #tpu.pipeline_mode<synchronous>, transform_indices = @transform_19, window_bounds = array<i64: 1, 1>}, {pipeline_mode = #tpu.pipeline_mode<synchronous>, transform_indices = @transform_20, window_bounds = array<i64: 64, 64>}, {pipeline_mode = #tpu.pipeline_mode<synchronous>, transform_indices = @transform_21, window_bounds = array<i64: 32, 64>}, {pipeline_mode = #tpu.pipeline_mode<synchronous>, transform_indices = @transform_22, window_bounds = array<i64: 1, 64>}, {transform_indices = @transform_23, window_bounds = array<i64: 64, 128>}, {transform_indices = @transform_24, window_bounds = array<i64: 1, 128>}, {pipeline_mode = #tpu.pipeline_mode<synchronous>, transform_indices = @transform_25, window_bounds = array<i64: 8, 32>}, {pipeline_mode = #tpu.pipeline_mode<synchronous>, transform_indices = @transform_26, window_bounds = array<i64: 8, 32>}, {pipeline_mode = #tpu.pipeline_mode<synchronous>, transform_indices = @transform_27, window_bounds = array<i64: 8, 8>}, {pipeline_mode = #tpu.pipeline_mode<synchronous>, transform_indices = @transform_28, window_bounds = array<i64: 8, 2>}]} {
    %c0 = arith.constant 0 : index
    %c0_0 = arith.constant 0 : index
    %0 = vector.load %arg10[%c0, %c0_0] : memref<8x1xi32, #tpu.memory_space<vmem>>, vector<8x1xi32>
    %c0_i32 = arith.constant 0 : i32
    %1 = arith.cmpi eq, %arg0, %c0_i32 : i32
    %2 = arith.extui %1 : i1 to i32
    %c0_i32_1 = arith.constant 0 : i32
    %3 = arith.cmpi ne, %2, %c0_i32_1 : i32
    scf.if %3 {
      %c0_24 = arith.constant 0 : index
      %c0_25 = arith.constant 0 : index
      %45 = vector.load %arg1[%c0_24, %c0_25] : memref<8x8xf32, #tpu.memory_space<vmem>>, vector<8x8xf32>
      %c0_26 = arith.constant 0 : index
      %c0_27 = arith.constant 0 : index
      %46 = vector.load %arg2[%c0_26, %c0_27] : memref<8x32xf32, #tpu.memory_space<vmem>>, vector<8x32xf32>
      %c0_28 = arith.constant 0 : index
      %c0_29 = arith.constant 0 : index
      %47 = vector.load %arg3[%c0_28, %c0_29] : memref<8x32xf32, #tpu.memory_space<vmem>>, vector<8x32xf32>
      %c0_30 = arith.constant 0 : index
      %c0_31 = arith.constant 0 : index
      %48 = vector.load %arg11[%c0_30, %c0_31] : memref<8x128xf32, #tpu.memory_space<vmem>>, vector<8x128xf32>
      %cst_32 = arith.constant dense<0.000000e+00> : vector<8x128xf32>
      %49 = tpu.matmul %45, %48, %cst_32 {dimension_numbers = #tpu.dot_dimension_numbers<[1], [0], [0], [1], [0, 0, 1, 1], [], []>} : vector<8x8xf32>, vector<8x128xf32>, vector<8x128xf32> -> vector<8x128xf32>
      %c0_33 = arith.constant 0 : index
      %c0_34 = arith.constant 0 : index
      %50 = vector.load %arg12[%c0_33, %c0_34] : memref<32x128xf32, #tpu.memory_space<vmem>>, vector<32x128xf32>
      %cst_35 = arith.constant dense<0.000000e+00> : vector<8x128xf32>
      %51 = tpu.matmul %46, %50, %cst_35 {dimension_numbers = #tpu.dot_dimension_numbers<[1], [0], [0], [1], [0, 0, 1, 1], [], []>} : vector<8x32xf32>, vector<32x128xf32>, vector<8x128xf32> -> vector<8x128xf32>
      %52 = arith.addf %49, %51 : vector<8x128xf32>
      %c0_36 = arith.constant 0 : index
      %c0_37 = arith.constant 0 : index
      %53 = vector.load %arg13[%c0_36, %c0_37] : memref<1x128xf32, #tpu.memory_space<vmem>>, vector<1x128xf32>
      %54 = vector.broadcast %53 : vector<1x128xf32> to vector<8x128xf32>
      %55 = arith.addf %52, %54 : vector<8x128xf32>
      %56 = vector.extract_strided_slice %55 {offsets = [0, 0], sizes = [8, 32], strides = [1, 1]} : vector<8x128xf32> to vector<8x32xf32>
      %57 = arith.negf %56 : vector<8x32xf32>
      %58 = math.exp %57 : vector<8x32xf32>
      %cst_38 = arith.constant 1.000000e+00 : f32
      %59 = vector.broadcast %cst_38 : f32 to vector<8x32xf32>
      %60 = arith.addf %59, %58 : vector<8x32xf32>
      %61 = arith.divf %59, %60 : vector<8x32xf32>
      %62 = vector.extract_strided_slice %55 {offsets = [0, 32], sizes = [8, 32], strides = [1, 1]} : vector<8x128xf32> to vector<8x32xf32>
      %63 = arith.negf %62 : vector<8x32xf32>
      %64 = math.exp %63 : vector<8x32xf32>
      %cst_39 = arith.constant 1.000000e+00 : f32
      %65 = vector.broadcast %cst_39 : f32 to vector<8x32xf32>
      %66 = arith.addf %65, %64 : vector<8x32xf32>
      %67 = arith.divf %65, %66 : vector<8x32xf32>
      %68 = vector.extract_strided_slice %55 {offsets = [0, 64], sizes = [8, 32], strides = [1, 1]} : vector<8x128xf32> to vector<8x32xf32>
      %69 = math.tanh %68 : vector<8x32xf32>
      %70 = vector.extract_strided_slice %55 {offsets = [0, 96], sizes = [8, 32], strides = [1, 1]} : vector<8x128xf32> to vector<8x32xf32>
      %71 = arith.negf %70 : vector<8x32xf32>
      %72 = math.exp %71 : vector<8x32xf32>
      %cst_40 = arith.constant 1.000000e+00 : f32
      %73 = vector.broadcast %cst_40 : f32 to vector<8x32xf32>
      %74 = arith.addf %73, %72 : vector<8x32xf32>
      %75 = arith.divf %73, %74 : vector<8x32xf32>
      %76 = arith.mulf %67, %47 : vector<8x32xf32>
      %77 = arith.mulf %61, %69 : vector<8x32xf32>
      %78 = arith.addf %76, %77 : vector<8x32xf32>
      %79 = math.tanh %78 : vector<8x32xf32>
      %80 = arith.mulf %75, %79 : vector<8x32xf32>
      %c0_41 = arith.constant 0 : index
      %c0_42 = arith.constant 0 : index
      %81 = vector.load %arg26[%c0_41, %c0_42] : memref<8x32xf32, #tpu.memory_space<vmem>>, vector<8x32xf32>
      tpu.vector_store %arg26[%c0_41, %c0_42], %80 {strides = array<i32>} : memref<8x32xf32, #tpu.memory_space<vmem>>, vector<8x32xf32>,
      %c0_43 = arith.constant 0 : index
      %c0_44 = arith.constant 0 : index
      %82 = vector.load %arg27[%c0_43, %c0_44] : memref<8x32xf32, #tpu.memory_space<vmem>>, vector<8x32xf32>
      tpu.vector_store %arg27[%c0_43, %c0_44], %78 {strides = array<i32>} : memref<8x32xf32, #tpu.memory_space<vmem>>, vector<8x32xf32>,
      %c0_45 = arith.constant 0 : index
      %c0_46 = arith.constant 0 : index
      %c0_47 = arith.constant 0 : index
      %83 = vector.load %arg4[%c0_45, %c0_46, %c0_47] : memref<8x8x64xf32, #tpu.memory_space<vmem>>, vector<8x8x64xf32>
      %c0_48 = arith.constant 0 : index
      %c0_49 = arith.constant 0 : index
      %84 = vector.load %arg6[%c0_48, %c0_49] : memref<8x8xf32, #tpu.memory_space<vmem>>, vector<8x8xf32>
      %c0_50 = arith.constant 0 : index
      %c0_51 = arith.constant 0 : index
      %85 = vector.load %arg7[%c0_50, %c0_51] : memref<8x8xf32, #tpu.memory_space<vmem>>, vector<8x8xf32>
      %c0_52 = arith.constant 0 : index
      %c0_53 = arith.constant 0 : index
      %c0_54 = arith.constant 0 : index
      %86 = vector.load %arg5[%c0_52, %c0_53, %c0_54] : memref<8x8x32xf32, #tpu.memory_space<vmem>>, vector<8x8x32xf32>
      %c0_55 = arith.constant 0 : index
      %c0_56 = arith.constant 0 : index
      %87 = vector.load %arg14[%c0_55, %c0_56] : memref<32x32xf32, #tpu.memory_space<vmem>>, vector<32x32xf32>
      %cst_57 = arith.constant dense<0.000000e+00> : vector<8x32xf32>
      %88 = tpu.matmul %80, %87, %cst_57 {dimension_numbers = #tpu.dot_dimension_numbers<[1], [0], [0], [1], [0, 0, 1, 1], [], []>} : vector<8x32xf32>, vector<32x32xf32>, vector<8x32xf32> -> vector<8x32xf32>
      %89 = vector.shape_cast %88 : vector<8x32xf32> to vector<8x1x32xf32>
      %90 = vector.broadcast %89 : vector<8x1x32xf32> to vector<8x8x32xf32>
      %91 = arith.addf %86, %90 : vector<8x8x32xf32>
      %92 = vector.shape_cast %84 : vector<8x8xf32> to vector<8x8x1xf32>
      %c0_58 = arith.constant 0 : index
      %c0_59 = arith.constant 0 : index
      %93 = vector.load %arg15[%c0_58, %c0_59] : memref<1x32xf32, #tpu.memory_space<vmem>>, vector<1x32xf32>
      %94 = vector.shape_cast %93 : vector<1x32xf32> to vector<1x1x32xf32>
      %95 = vector.broadcast %92 : vector<8x8x1xf32> to vector<8x8x32xf32>
      %96 = vector.broadcast %94 : vector<1x1x32xf32> to vector<8x8x32xf32>
      %97 = arith.mulf %95, %96 : vector<8x8x32xf32>
      %98 = arith.addf %91, %97 : vector<8x8x32xf32>
      %99 = math.tanh %98 : vector<8x8x32xf32>
      %c0_60 = arith.constant 0 : index
      %c0_61 = arith.constant 0 : index
      %100 = vector.load %arg16[%c0_60, %c0_61] : memref<1x32xf32, #tpu.memory_space<vmem>>, vector<1x32xf32>
      %101 = vector.shape_cast %100 : vector<1x32xf32> to vector<1x1x32xf32>
      %102 = vector.broadcast %101 : vector<1x1x32xf32> to vector<8x8x32xf32>
      %103 = arith.mulf %99, %102 : vector<8x8x32xf32>
      %cst_62 = arith.constant dense<0.000000e+00> : vector<8x8xf32>
      %104 = vector.multi_reduction <add>, %103, %cst_62 [2] : vector<8x8x32xf32> to vector<8x8xf32>
      %cst_63 = arith.constant 0.000000e+00 : f32
      %105 = vector.broadcast %cst_63 : f32 to vector<8x8xf32>
      %106 = arith.cmpf ogt, %85, %105 : vector<8x8xf32>
      %107 = arith.extui %106 : vector<8x8xi1> to vector<8x8xi32>
      %108 = arith.sitofp %107 : vector<8x8xi32> to vector<8x8xf32>
      %cst_64 = arith.constant 0.000000e+00 : f32
      %109 = vector.broadcast %cst_64 : f32 to vector<8x8xf32>
      %110 = arith.cmpf ogt, %85, %109 : vector<8x8xf32>
      %cst_65 = arith.constant -1.000000e+30 : f32
      %111 = vector.broadcast %cst_65 : f32 to vector<8x8xf32>
      %112 = arith.select %110, %104, %111 : vector<8x8xi1>, vector<8x8xf32>
      %cst_66 = arith.constant dense<0xFF800000> : vector<8xf32>
      %113 = vector.multi_reduction <maximumf>, %112, %cst_66 [1] : vector<8x8xf32> to vector<8xf32>
      %114 = vector.shape_cast %113 : vector<8xf32> to vector<8x1xf32>
      %115 = vector.broadcast %114 : vector<8x1xf32> to vector<8x8xf32>
      %116 = arith.subf %112, %115 : vector<8x8xf32>
      %117 = math.exp %116 : vector<8x8xf32>
      %118 = arith.mulf %117, %108 : vector<8x8xf32>
      %cst_67 = arith.constant dense<0.000000e+00> : vector<8xf32>
      %119 = vector.multi_reduction <add>, %118, %cst_67 [1] : vector<8x8xf32> to vector<8xf32>
      %120 = vector.shape_cast %119 : vector<8xf32> to vector<8x1xf32>
      %cst_68 = arith.constant 1.000000e-30 : f32
      %121 = vector.broadcast %cst_68 : f32 to vector<8x1xf32>
      %122 = arith.maximumf %120, %121 : vector<8x1xf32>
      %123 = vector.broadcast %122 : vector<8x1xf32> to vector<8x8xf32>
      %124 = arith.divf %118, %123 : vector<8x8xf32>
      %125 = arith.minimumf %124, %84 : vector<8x8xf32>
      %cst_69 = arith.constant dense<0.000000e+00> : vector<8xf32>
      %126 = vector.multi_reduction <add>, %125, %cst_69 [1] : vector<8x8xf32> to vector<8xf32>
      %127 = vector.shape_cast %126 : vector<8xf32> to vector<8x1xf32>
      %c0_70 = arith.constant 0 : index
      %c0_71 = arith.constant 0 : index
      %128 = vector.load %arg33[%c0_70, %c0_71] : memref<8x1xf32, #tpu.memory_space<vmem>>, vector<8x1xf32>
      tpu.vector_store %arg33[%c0_70, %c0_71], %127 {strides = array<i32>} : memref<8x1xf32, #tpu.memory_space<vmem>>, vector<8x1xf32>,
      %129 = arith.addf %84, %124 : vector<8x8xf32>
      %c0_72 = arith.constant 0 : index
      %c0_73 = arith.constant 0 : index
      %130 = vector.load %arg28[%c0_72, %c0_73] : memref<8x8xf32, #tpu.memory_space<vmem>>, vector<8x8xf32>
      tpu.vector_store %arg28[%c0_72, %c0_73], %129 {strides = array<i32>} : memref<8x8xf32, #tpu.memory_space<vmem>>, vector<8x8xf32>,
      %131 = vector.shape_cast %124 : vector<8x8xf32> to vector<8x8x1xf32>
      %132 = vector.broadcast %131 : vector<8x8x1xf32> to vector<8x8x64xf32>
      %133 = arith.mulf %132, %83 : vector<8x8x64xf32>
      %cst_74 = arith.constant dense<0.000000e+00> : vector<8x64xf32>
      %134 = vector.multi_reduction <add>, %133, %cst_74 [1] : vector<8x8x64xf32> to vector<8x64xf32>
      %c0_75 = arith.constant 0 : index
      %c0_76 = arith.constant 0 : index
      %135 = vector.load %arg17[%c0_75, %c0_76] : memref<1x64xf32, #tpu.memory_space<vmem>>, vector<1x64xf32>
      %136 = vector.broadcast %135 : vector<1x64xf32> to vector<8x64xf32>
      %137 = arith.mulf %134, %136 : vector<8x64xf32>
      %cst_77 = arith.constant dense<0.000000e+00> : vector<8xf32>
      %138 = vector.multi_reduction <add>, %137, %cst_77 [1] : vector<8x64xf32> to vector<8xf32>
      %139 = vector.shape_cast %138 : vector<8xf32> to vector<8x1xf32>
      %c0_78 = arith.constant 0 : index
      %c0_79 = arith.constant 0 : index
      %140 = vector.load %arg18[%c0_78, %c0_79] : memref<1x32xf32, #tpu.memory_space<vmem>>, vector<1x32xf32>
      %141 = vector.broadcast %140 : vector<1x32xf32> to vector<8x32xf32>
      %142 = arith.mulf %80, %141 : vector<8x32xf32>
      %cst_80 = arith.constant dense<0.000000e+00> : vector<8xf32>
      %143 = vector.multi_reduction <add>, %142, %cst_80 [1] : vector<8x32xf32> to vector<8xf32>
      %144 = vector.shape_cast %143 : vector<8xf32> to vector<8x1xf32>
      %145 = arith.addf %139, %144 : vector<8x1xf32>
      %c0_81 = arith.constant 0 : index
      %c0_82 = arith.constant 0 : index
      %146 = vector.load %arg19[%c0_81, %c0_82] : memref<1x8xf32, #tpu.memory_space<vmem>>, vector<1x8xf32>
      %147 = vector.broadcast %146 : vector<1x8xf32> to vector<8x8xf32>
      %148 = arith.mulf %45, %147 : vector<8x8xf32>
      %cst_83 = arith.constant dense<0.000000e+00> : vector<8xf32>
      %149 = vector.multi_reduction <add>, %148, %cst_83 [1] : vector<8x8xf32> to vector<8xf32>
      %150 = vector.shape_cast %149 : vector<8xf32> to vector<8x1xf32>
      %151 = arith.addf %145, %150 : vector<8x1xf32>
      %c0_84 = arith.constant 0 : index
      %c0_85 = arith.constant 0 : index
      %152 = vector.load %arg20[%c0_84, %c0_85] : memref<1x1xf32, #tpu.memory_space<vmem>>, vector<1x1xf32>
      %153 = vector.broadcast %152 : vector<1x1xf32> to vector<8x1xf32>
      %154 = arith.addf %151, %153 : vector<8x1xf32>
      %155 = arith.negf %154 : vector<8x1xf32>
      %156 = math.exp %155 : vector<8x1xf32>
      %cst_86 = arith.constant 1.000000e+00 : f32
      %157 = vector.broadcast %cst_86 : f32 to vector<8x1xf32>
      %158 = arith.addf %157, %156 : vector<8x1xf32>
      %159 = arith.divf %157, %158 : vector<8x1xf32>
      %c0_87 = arith.constant 0 : index
      %c0_88 = arith.constant 0 : index
      %160 = vector.load %arg31[%c0_87, %c0_88] : memref<8x1xf32, #tpu.memory_space<vmem>>, vector<8x1xf32>
      tpu.vector_store %arg31[%c0_87, %c0_88], %159 {strides = array<i32>} : memref<8x1xf32, #tpu.memory_space<vmem>>, vector<8x1xf32>,
      %c0_89 = arith.constant 0 : index
      %c0_90 = arith.constant 0 : index
      %161 = vector.load %arg8[%c0_89, %c0_90] : memref<8x8xi32, #tpu.memory_space<vmem>>, vector<8x8xi32>
      %162 = vector.broadcast %0 : vector<8x1xi32> to vector<8x8xi32>
      %163 = arith.cmpi eq, %161, %162 : vector<8x8xi32>
      %164 = arith.extui %163 : vector<8x8xi1> to vector<8x8xi32>
      %165 = arith.sitofp %164 : vector<8x8xi32> to vector<8x8xf32>
      %cst_91 = arith.constant 1.000000e+00 : f32
      %166 = vector.broadcast %cst_91 : f32 to vector<8x1xf32>
      %167 = arith.subf %166, %159 : vector<8x1xf32>
      %168 = arith.mulf %124, %165 : vector<8x8xf32>
      %cst_92 = arith.constant dense<0.000000e+00> : vector<8xf32>
      %169 = vector.multi_reduction <add>, %168, %cst_92 [1] : vector<8x8xf32> to vector<8xf32>
      %170 = vector.shape_cast %169 : vector<8xf32> to vector<8x1xf32>
      %171 = arith.mulf %167, %170 : vector<8x1xf32>
      %c0_93 = arith.constant 0 : index
      %c0_94 = arith.constant 0 : index
      %172 = vector.load %arg9[%c0_93, %c0_94] : memref<8x8xf32, #tpu.memory_space<vmem>>, vector<8x8xf32>
      %173 = tpu.iota {dimensions = array<i32: 1>} : vector<8x8xi32>
      %c200_i32 = arith.constant 200 : i32
      %174 = vector.broadcast %c200_i32 : i32 to vector<8x1xi32>
      %175 = arith.subi %0, %174 : vector<8x1xi32>
      %176 = vector.broadcast %175 : vector<8x1xi32> to vector<8x8xi32>
      %177 = arith.cmpi eq, %176, %173 : vector<8x8xi32>
      %178 = arith.extui %177 : vector<8x8xi1> to vector<8x8xi32>
      %179 = arith.sitofp %178 : vector<8x8xi32> to vector<8x8xf32>
      %180 = arith.mulf %172, %179 : vector<8x8xf32>
      %cst_95 = arith.constant dense<0.000000e+00> : vector<8xf32>
      %181 = vector.multi_reduction <add>, %180, %cst_95 [1] : vector<8x8xf32> to vector<8xf32>
      %182 = vector.shape_cast %181 : vector<8xf32> to vector<8x1xf32>
      %183 = arith.addf %171, %182 : vector<8x1xf32>
      %c0_96 = arith.constant 0 : index
      %c0_97 = arith.constant 0 : index
      %184 = vector.load %arg32[%c0_96, %c0_97] : memref<8x1xf32, #tpu.memory_space<vmem>>, vector<8x1xf32>
      tpu.vector_store %arg32[%c0_96, %c0_97], %183 {strides = array<i32>} : memref<8x1xf32, #tpu.memory_space<vmem>>, vector<8x1xf32>,
      %c0_98 = arith.constant 0 : index
      %c0_99 = arith.constant 0 : index
      %185 = vector.load %arg21[%c0_98, %c0_99] : memref<64x64xf32, #tpu.memory_space<vmem>>, vector<64x64xf32>
      %cst_100 = arith.constant dense<0.000000e+00> : vector<8x64xf32>
      %186 = tpu.matmul %134, %185, %cst_100 {dimension_numbers = #tpu.dot_dimension_numbers<[1], [0], [0], [1], [0, 0, 1, 1], [], []>} : vector<8x64xf32>, vector<64x64xf32>, vector<8x64xf32> -> vector<8x64xf32>
      %c0_101 = arith.constant 0 : index
      %c0_102 = arith.constant 0 : index
      %187 = vector.load %arg22[%c0_101, %c0_102] : memref<32x64xf32, #tpu.memory_space<vmem>>, vector<32x64xf32>
      %cst_103 = arith.constant dense<0.000000e+00> : vector<8x64xf32>
      %188 = tpu.matmul %80, %187, %cst_103 {dimension_numbers = #tpu.dot_dimension_numbers<[1], [0], [0], [1], [0, 0, 1, 1], [], []>} : vector<8x32xf32>, vector<32x64xf32>, vector<8x64xf32> -> vector<8x64xf32>
      %189 = arith.addf %186, %188 : vector<8x64xf32>
      %c0_104 = arith.constant 0 : index
      %c0_105 = arith.constant 0 : index
      %190 = vector.load %arg23[%c0_104, %c0_105] : memref<1x64xf32, #tpu.memory_space<vmem>>, vector<1x64xf32>
      %191 = vector.broadcast %190 : vector<1x64xf32> to vector<8x64xf32>
      %192 = arith.addf %189, %191 : vector<8x64xf32>
      %c0_106 = arith.constant 0 : index
      %c0_107 = arith.constant 0 : index
      %193 = vector.load %arg30[%c0_106, %c0_107] : memref<8x64xf32, #tpu.memory_space<vmem>>, vector<8x64xf32>
      tpu.vector_store %arg30[%c0_106, %c0_107], %192 {strides = array<i32>} : memref<8x64xf32, #tpu.memory_space<vmem>>, vector<8x64xf32>,
      %cst_108 = arith.constant -1.000000e+30 : f32
      %194 = vector.broadcast %cst_108 : f32 to vector<8x1xf32>
      %c0_109 = arith.constant 0 : index
      %c0_110 = arith.constant 0 : index
      %195 = vector.load %arg34[%c0_109, %c0_110] : memref<8x1xf32, #tpu.memory_space<vmem>>, vector<8x1xf32>
      tpu.vector_store %arg34[%c0_109, %c0_110], %194 {strides = array<i32>} : memref<8x1xf32, #tpu.memory_space<vmem>>, vector<8x1xf32>,
      %cst_111 = arith.constant 0.000000e+00 : f32
      %196 = vector.broadcast %cst_111 : f32 to vector<8x1xf32>
      %c0_112 = arith.constant 0 : index
      %c0_113 = arith.constant 0 : index
      %197 = vector.load %arg35[%c0_112, %c0_113] : memref<8x1xf32, #tpu.memory_space<vmem>>, vector<8x1xf32>
      tpu.vector_store %arg35[%c0_112, %c0_113], %196 {strides = array<i32>} : memref<8x1xf32, #tpu.memory_space<vmem>>, vector<8x1xf32>,
      %cst_114 = arith.constant 0.000000e+00 : f32
      %198 = vector.broadcast %cst_114 : f32 to vector<8x1xf32>
      %c0_115 = arith.constant 0 : index
      %c0_116 = arith.constant 0 : index
      %199 = vector.load %arg36[%c0_115, %c0_116] : memref<8x1xf32, #tpu.memory_space<vmem>>, vector<8x1xf32>
      tpu.vector_store %arg36[%c0_115, %c0_116], %198 {strides = array<i32>} : memref<8x1xf32, #tpu.memory_space<vmem>>, vector<8x1xf32>,
    } else {
    }
    %c0_2 = arith.constant 0 : index
    %c0_3 = arith.constant 0 : index
    %4 = vector.load %arg30[%c0_2, %c0_3] : memref<8x64xf32, #tpu.memory_space<vmem>>, vector<8x64xf32>
    %5 = arith.truncf %4 : vector<8x64xf32> to vector<8x64xbf16>
    %c0_4 = arith.constant 0 : index
    %c0_5 = arith.constant 0 : index
    %6 = vector.load %arg24[%c0_4, %c0_5] : memref<64x128xbf16, #tpu.memory_space<vmem>>, vector<64x128xbf16>
    %cst = arith.constant dense<0.000000e+00> : vector<8x128xf32>
    %7 = tpu.matmul %5, %6, %cst {dimension_numbers = #tpu.dot_dimension_numbers<[1], [0], [0], [1], [0, 0, 1, 1], [], []>} : vector<8x64xbf16>, vector<64x128xbf16>, vector<8x128xf32> -> vector<8x128xf32>
    %c0_6 = arith.constant 0 : index
    %c0_7 = arith.constant 0 : index
    %8 = vector.load %arg25[%c0_6, %c0_7] : memref<1x128xf32, #tpu.memory_space<vmem>>, vector<1x128xf32>
    %9 = vector.broadcast %8 : vector<1x128xf32> to vector<8x128xf32>
    %10 = arith.addf %7, %9 : vector<8x128xf32>
    %c0_8 = arith.constant 0 : index
    %c0_9 = arith.constant 0 : index
    %11 = vector.load %arg34[%c0_8, %c0_9] : memref<8x1xf32, #tpu.memory_space<vmem>>, vector<8x1xf32>
    %cst_10 = arith.constant dense<0xFF800000> : vector<8xf32>
    %12 = vector.multi_reduction <maximumf>, %10, %cst_10 [1] : vector<8x128xf32> to vector<8xf32>
    %13 = vector.shape_cast %12 : vector<8xf32> to vector<8x1xf32>
    %14 = arith.maximumf %11, %13 : vector<8x1xf32>
    %15 = arith.subf %11, %14 : vector<8x1xf32>
    %16 = math.exp %15 : vector<8x1xf32>
    %17 = vector.broadcast %14 : vector<8x1xf32> to vector<8x128xf32>
    %18 = arith.subf %10, %17 : vector<8x128xf32>
    %19 = math.exp %18 : vector<8x128xf32>
    %c128_i32 = arith.constant 128 : i32
    %20 = arith.muli %arg0, %c128_i32 : i32
    %21 = tpu.iota {dimensions = array<i32: 1>} : vector<8x128xi32>
    %22 = vector.broadcast %20 : i32 to vector<8x128xi32>
    %23 = arith.addi %22, %21 : vector<8x128xi32>
    %24 = vector.broadcast %0 : vector<8x1xi32> to vector<8x128xi32>
    %25 = arith.cmpi eq, %23, %24 : vector<8x128xi32>
    %26 = arith.extui %25 : vector<8x128xi1> to vector<8x128xi32>
    %27 = arith.sitofp %26 : vector<8x128xi32> to vector<8x128xf32>
    %c0_11 = arith.constant 0 : index
    %c0_12 = arith.constant 0 : index
    %28 = vector.load %arg35[%c0_11, %c0_12] : memref<8x1xf32, #tpu.memory_space<vmem>>, vector<8x1xf32>
    %29 = arith.mulf %16, %28 : vector<8x1xf32>
    %cst_13 = arith.constant dense<0.000000e+00> : vector<8xf32>
    %30 = vector.multi_reduction <add>, %19, %cst_13 [1] : vector<8x128xf32> to vector<8xf32>
    %31 = vector.shape_cast %30 : vector<8xf32> to vector<8x1xf32>
    %32 = arith.addf %29, %31 : vector<8x1xf32>
    %c0_14 = arith.constant 0 : index
    %c0_15 = arith.constant 0 : index
    %33 = vector.load %arg35[%c0_14, %c0_15] : memref<8x1xf32, #tpu.memory_space<vmem>>, vector<8x1xf32>
    tpu.vector_store %arg35[%c0_14, %c0_15], %32 {strides = array<i32>} : memref<8x1xf32, #tpu.memory_space<vmem>>, vector<8x1xf32>,
    %c0_16 = arith.constant 0 : index
    %c0_17 = arith.constant 0 : index
    %34 = vector.load %arg36[%c0_16, %c0_17] : memref<8x1xf32, #tpu.memory_space<vmem>>, vector<8x1xf32>
    %35 = arith.mulf %16, %34 : vector<8x1xf32>
    %36 = arith.mulf %19, %27 : vector<8x128xf32>
    %cst_18 = arith.constant dense<0.000000e+00> : vector<8xf32>
    %37 = vector.multi_reduction <add>, %36, %cst_18 [1] : vector<8x128xf32> to vector<8xf32>
    %38 = vector.shape_cast %37 : vector<8xf32> to vector<8x1xf32>
    %39 = arith.addf %35, %38 : vector<8x1xf32>
    %c0_19 = arith.constant 0 : index
    %c0_20 = arith.constant 0 : index
    %40 = vector.load %arg36[%c0_19, %c0_20] : memref<8x1xf32, #tpu.memory_space<vmem>>, vector<8x1xf32>
    tpu.vector_store %arg36[%c0_19, %c0_20], %39 {strides = array<i32>} : memref<8x1xf32, #tpu.memory_space<vmem>>, vector<8x1xf32>,
    %c0_21 = arith.constant 0 : index
    %c0_22 = arith.constant 0 : index
    %41 = vector.load %arg34[%c0_21, %c0_22] : memref<8x1xf32, #tpu.memory_space<vmem>>, vector<8x1xf32>
    tpu.vector_store %arg34[%c0_21, %c0_22], %14 {strides = array<i32>} : memref<8x1xf32, #tpu.memory_space<vmem>>, vector<8x1xf32>,
    %c1_i32 = arith.constant 1 : i32
    %42 = arith.cmpi eq, %arg0, %c1_i32 : i32
    %43 = arith.extui %42 : i1 to i32
    %c0_i32_23 = arith.constant 0 : i32
    %44 = arith.cmpi ne, %43, %c0_i32_23 : i32
    scf.if %44 {
      %c0_24 = arith.constant 0 : index
      %c0_25 = arith.constant 0 : index
      %45 = vector.load %arg31[%c0_24, %c0_25] : memref<8x1xf32, #tpu.memory_space<vmem>>, vector<8x1xf32>
      %c0_26 = arith.constant 0 : index
      %c0_27 = arith.constant 0 : index
      %46 = vector.load %arg36[%c0_26, %c0_27] : memref<8x1xf32, #tpu.memory_space<vmem>>, vector<8x1xf32>
      %47 = arith.mulf %45, %46 : vector<8x1xf32>
      %c0_28 = arith.constant 0 : index
      %c0_29 = arith.constant 0 : index
      %48 = vector.load %arg35[%c0_28, %c0_29] : memref<8x1xf32, #tpu.memory_space<vmem>>, vector<8x1xf32>
      %49 = tpu.reciprocal %48 {approx = true} : vector<8x1xf32> -> vector<8x1xf32>
      %50 = arith.mulf %47, %49 : vector<8x1xf32>
      %c0_30 = arith.constant 0 : index
      %c0_31 = arith.constant 0 : index
      %51 = vector.load %arg32[%c0_30, %c0_31] : memref<8x1xf32, #tpu.memory_space<vmem>>, vector<8x1xf32>
      %52 = arith.addf %50, %51 : vector<8x1xf32>
      %c0_32 = arith.constant 0 : index
      %c0_33 = arith.constant 0 : index
      %53 = vector.load %arg29[%c0_32, %c0_33] : memref<8x2xf32, #tpu.memory_space<vmem>>, vector<8x1xf32>
      tpu.vector_store %arg29[%c0_32, %c0_33], %52 {strides = array<i32>} : memref<8x2xf32, #tpu.memory_space<vmem>>, vector<8x1xf32>,
      %c0_34 = arith.constant 0 : index
      %c0_35 = arith.constant 0 : index
      %54 = vector.load %arg33[%c0_34, %c0_35] : memref<8x1xf32, #tpu.memory_space<vmem>>, vector<8x1xf32>
      %c0_36 = arith.constant 0 : index
      %c1 = arith.constant 1 : index
      %55 = vector.load %arg29[%c0_36, %c1] : memref<8x2xf32, #tpu.memory_space<vmem>>, vector<8x1xf32>
      tpu.vector_store %arg29[%c0_36, %c1], %54 {strides = array<i32>} : memref<8x2xf32, #tpu.memory_space<vmem>>, vector<8x1xf32>,
    } else {
    }
    return
  }
  func.func @transform_0(%arg0: i32) -> (i32, i32) {
    %c0_i32 = arith.constant 0 : i32
    %c0_i32_0 = arith.constant 0 : i32
    %c0_i32_1 = arith.constant 0 : i32
    return %c0_i32, %c0_i32_0 : i32, i32
  }
  func.func @transform_1(%arg0: i32) -> (i32, i32) {
    %c0_i32 = arith.constant 0 : i32
    %c0_i32_0 = arith.constant 0 : i32
    %c0_i32_1 = arith.constant 0 : i32
    return %c0_i32, %c0_i32_0 : i32, i32
  }
  func.func @transform_2(%arg0: i32) -> (i32, i32) {
    %c0_i32 = arith.constant 0 : i32
    %c0_i32_0 = arith.constant 0 : i32
    %c0_i32_1 = arith.constant 0 : i32
    return %c0_i32, %c0_i32_0 : i32, i32
  }
  func.func @transform_3(%arg0: i32) -> (i32, i32, i32) {
    %c0_i32 = arith.constant 0 : i32
    %c0_i32_0 = arith.constant 0 : i32
    %c0_i32_1 = arith.constant 0 : i32
    %c0_i32_2 = arith.constant 0 : i32
    return %c0_i32, %c0_i32_0, %c0_i32_1 : i32, i32, i32
  }
  func.func @transform_4(%arg0: i32) -> (i32, i32, i32) {
    %c0_i32 = arith.constant 0 : i32
    %c0_i32_0 = arith.constant 0 : i32
    %c0_i32_1 = arith.constant 0 : i32
    %c0_i32_2 = arith.constant 0 : i32
    return %c0_i32, %c0_i32_0, %c0_i32_1 : i32, i32, i32
  }
  func.func @transform_5(%arg0: i32) -> (i32, i32) {
    %c0_i32 = arith.constant 0 : i32
    %c0_i32_0 = arith.constant 0 : i32
    %c0_i32_1 = arith.constant 0 : i32
    return %c0_i32, %c0_i32_0 : i32, i32
  }
  func.func @transform_6(%arg0: i32) -> (i32, i32) {
    %c0_i32 = arith.constant 0 : i32
    %c0_i32_0 = arith.constant 0 : i32
    %c0_i32_1 = arith.constant 0 : i32
    return %c0_i32, %c0_i32_0 : i32, i32
  }
  func.func @transform_7(%arg0: i32) -> (i32, i32) {
    %c0_i32 = arith.constant 0 : i32
    %c0_i32_0 = arith.constant 0 : i32
    %c0_i32_1 = arith.constant 0 : i32
    return %c0_i32, %c0_i32_0 : i32, i32
  }
  func.func @transform_8(%arg0: i32) -> (i32, i32) {
    %c0_i32 = arith.constant 0 : i32
    %c0_i32_0 = arith.constant 0 : i32
    %c0_i32_1 = arith.constant 0 : i32
    return %c0_i32, %c0_i32_0 : i32, i32
  }
  func.func @transform_9(%arg0: i32) -> (i32, i32) {
    %c0_i32 = arith.constant 0 : i32
    %c0_i32_0 = arith.constant 0 : i32
    %c0_i32_1 = arith.constant 0 : i32
    return %c0_i32, %c0_i32_0 : i32, i32
  }
  func.func @transform_10(%arg0: i32) -> (i32, i32) {
    %c0_i32 = arith.constant 0 : i32
    %c0_i32_0 = arith.constant 0 : i32
    %c0_i32_1 = arith.constant 0 : i32
    return %c0_i32, %c0_i32_0 : i32, i32
  }
  func.func @transform_11(%arg0: i32) -> (i32, i32) {
    %c0_i32 = arith.constant 0 : i32
    %c0_i32_0 = arith.constant 0 : i32
    %c0_i32_1 = arith.constant 0 : i32
    return %c0_i32, %c0_i32_0 : i32, i32
  }
  func.func @transform_12(%arg0: i32) -> (i32, i32) {
    %c0_i32 = arith.constant 0 : i32
    %c0_i32_0 = arith.constant 0 : i32
    %c0_i32_1 = arith.constant 0 : i32
    return %c0_i32, %c0_i32_0 : i32, i32
  }
  func.func @transform_13(%arg0: i32) -> (i32, i32) {
    %c0_i32 = arith.constant 0 : i32
    %c0_i32_0 = arith.constant 0 : i32
    %c0_i32_1 = arith.constant 0 : i32
    return %c0_i32, %c0_i32_0 : i32, i32
  }
  func.func @transform_14(%arg0: i32) -> (i32, i32) {
    %c0_i32 = arith.constant 0 : i32
    %c0_i32_0 = arith.constant 0 : i32
    %c0_i32_1 = arith.constant 0 : i32
    return %c0_i32, %c0_i32_0 : i32, i32
  }
  func.func @transform_15(%arg0: i32) -> (i32, i32) {
    %c0_i32 = arith.constant 0 : i32
    %c0_i32_0 = arith.constant 0 : i32
    %c0_i32_1 = arith.constant 0 : i32
    return %c0_i32, %c0_i32_0 : i32, i32
  }
  func.func @transform_16(%arg0: i32) -> (i32, i32) {
    %c0_i32 = arith.constant 0 : i32
    %c0_i32_0 = arith.constant 0 : i32
    %c0_i32_1 = arith.constant 0 : i32
    return %c0_i32, %c0_i32_0 : i32, i32
  }
  func.func @transform_17(%arg0: i32) -> (i32, i32) {
    %c0_i32 = arith.constant 0 : i32
    %c0_i32_0 = arith.constant 0 : i32
    %c0_i32_1 = arith.constant 0 : i32
    return %c0_i32, %c0_i32_0 : i32, i32
  }
  func.func @transform_18(%arg0: i32) -> (i32, i32) {
    %c0_i32 = arith.constant 0 : i32
    %c0_i32_0 = arith.constant 0 : i32
    %c0_i32_1 = arith.constant 0 : i32
    return %c0_i32, %c0_i32_0 : i32, i32
  }
  func.func @transform_19(%arg0: i32) -> (i32, i32) {
    %c0_i32 = arith.constant 0 : i32
    %c0_i32_0 = arith.constant 0 : i32
    %c0_i32_1 = arith.constant 0 : i32
    return %c0_i32, %c0_i32_0 : i32, i32
  }
  func.func @transform_20(%arg0: i32) -> (i32, i32) {
    %c0_i32 = arith.constant 0 : i32
    %c0_i32_0 = arith.constant 0 : i32
    %c0_i32_1 = arith.constant 0 : i32
    return %c0_i32, %c0_i32_0 : i32, i32
  }
  func.func @transform_21(%arg0: i32) -> (i32, i32) {
    %c0_i32 = arith.constant 0 : i32
    %c0_i32_0 = arith.constant 0 : i32
    %c0_i32_1 = arith.constant 0 : i32
    return %c0_i32, %c0_i32_0 : i32, i32
  }
  func.func @transform_22(%arg0: i32) -> (i32, i32) {
    %c0_i32 = arith.constant 0 : i32
    %c0_i32_0 = arith.constant 0 : i32
    %c0_i32_1 = arith.constant 0 : i32
    return %c0_i32, %c0_i32_0 : i32, i32
  }
  func.func @transform_23(%arg0: i32) -> (i32, i32) {
    %c0_i32 = arith.constant 0 : i32
    %c0_i32_0 = arith.constant 0 : i32
    return %c0_i32, %arg0 : i32, i32
  }
  func.func @transform_24(%arg0: i32) -> (i32, i32) {
    %c0_i32 = arith.constant 0 : i32
    %c0_i32_0 = arith.constant 0 : i32
    return %c0_i32, %arg0 : i32, i32
  }
  func.func @transform_25(%arg0: i32) -> (i32, i32) {
    %c0_i32 = arith.constant 0 : i32
    %c0_i32_0 = arith.constant 0 : i32
    %c0_i32_1 = arith.constant 0 : i32
    return %c0_i32, %c0_i32_0 : i32, i32
  }
  func.func @transform_26(%arg0: i32) -> (i32, i32) {
    %c0_i32 = arith.constant 0 : i32
    %c0_i32_0 = arith.constant 0 : i32
    %c0_i32_1 = arith.constant 0 : i32
    return %c0_i32, %c0_i32_0 : i32, i32
  }
  func.func @transform_27(%arg0: i32) -> (i32, i32) {
    %c0_i32 = arith.constant 0 : i32
    %c0_i32_0 = arith.constant 0 : i32
    %c0_i32_1 = arith.constant 0 : i32
    return %c0_i32, %c0_i32_0 : i32, i32
  }
  func.func @transform_28(%arg0: i32) -> (i32, i32) {
    %c0_i32 = arith.constant 0 : i32
    %c0_i32_0 = arith.constant 0 : i32
    %c0_i32_1 = arith.constant 0 : i32
    return %c0_i32, %c0_i32_0 : i32, i32
  }
}

</mosaic_0001>

<llo_original>
// kernel: decode_one_step.1
$region0: #{decode_one_step.1}
  #allocation0 [shape = 'u32[]', space=smem, size = 0x4, offset = 0x4, fixed_abs, tag = 'smem constant byte address 0x4 - core index']
  #allocation1 [shape = 'u32[144,128]{1,0:T(1,128)}', space=vmem, size = 0x12000, scoped, tag = 'internal scratch']
  #allocation2 [shape = 'f32[8,64]{1,0:T(8,128)}', space=vmem, size = 0x1000, scoped, tag = 'scratch operand']
  #allocation3 [shape = 'f32[8,1]{1,0:T(8,128)}', space=vmem, size = 0x1000, scoped, tag = 'scratch operand']
  #allocation4 [shape = 'f32[8,1]{1,0:T(8,128)}', space=vmem, size = 0x1000, scoped, tag = 'scratch operand']
  #allocation5 [shape = 'f32[8,1]{1,0:T(8,128)}', space=vmem, size = 0x1000, scoped, tag = 'scratch operand']
  #allocation6 [shape = 'f32[8,1]{1,0:T(8,128)}', space=vmem, size = 0x1000, scoped, tag = 'scratch operand']
  #allocation7 [shape = 'f32[8,1]{1,0:T(8,128)}', space=vmem, size = 0x1000, scoped, tag = 'scratch operand']
  #allocation8 [shape = 'f32[8,1]{1,0:T(8,128)}', space=vmem, size = 0x1000, scoped, tag = 'scratch operand']
  #allocation9 [shape = 'f32[1,1]{1,0:T(1,128)S(1)}', space=vmem, size = 0x200, scoped, tag = 'scoped memory for decode_one_step.1']
  %s0 = inlined_call_operand.vmem [shape: f32[8,8], index: 0, kind: input, shape index: {}]
  %s1 = inlined_call_operand.vmem [shape: f32[8,32], index: 1, kind: input, shape index: {}]
  %s2 = inlined_call_operand.vmem [shape: f32[8,32], index: 2, kind: input, shape index: {}]
  %s3 = inlined_call_operand.vmem [shape: f32[8,8,64], index: 3, kind: input, shape index: {}]
  %s4 = inlined_call_operand.vmem [shape: f32[8,8,32], index: 4, kind: input, shape index: {}]
  %s5 = inlined_call_operand.vmem [shape: f32[8,8], index: 5, kind: input, shape index: {}]
  %s6 = inlined_call_operand.vmem [shape: f32[8,8], index: 6, kind: input, shape index: {}]
  %s7 = inlined_call_operand.vmem [shape: s32[8,8], index: 7, kind: input, shape index: {}]
  %s8 = inlined_call_operand.vmem [shape: f32[8,8], index: 8, kind: input, shape index: {}]
  %s9 = inlined_call_operand.vmem [shape: s32[8,1], index: 9, kind: input, shape index: {}]
  %s10 = inlined_call_operand.vmem [shape: f32[8,128], index: 10, kind: input, shape index: {}]
  %s11 = inlined_call_operand.vmem [shape: f32[32,128], index: 11, kind: input, shape index: {}]
  %s12 = inlined_call_operand.vmem [shape: f32[1,128], index: 12, kind: input, shape index: {}]
  %s13 = inlined_call_operand.vmem [shape: f32[32,32], index: 13, kind: input, shape index: {}]
  %s14 = inlined_call_operand.vmem [shape: f32[1,32], index: 14, kind: input, shape index: {}]
  %s15 = inlined_call_operand.vmem [shape: f32[1,32], index: 15, kind: input, shape index: {}]
  %s16 = inlined_call_operand.vmem [shape: f32[1,64], index: 16, kind: input, shape index: {}]
  %s17 = inlined_call_operand.vmem [shape: f32[1,32], index: 17, kind: input, shape index: {}]
  %s18 = inlined_call_operand.vmem [shape: f32[1,8], index: 18, kind: input, shape index: {}]
  %s19 = inlined_call_operand.<no memory space> [shape: f32[1,1], index: 19, kind: input, shape index: {}]
  %s20 = inlined_call_operand.vmem [shape: f32[64,64], index: 20, kind: input, shape index: {}]
  %s21 = inlined_call_operand.vmem [shape: f32[32,64], index: 21, kind: input, shape index: {}]
  %s22 = inlined_call_operand.vmem [shape: f32[1,64], index: 22, kind: input, shape index: {}]
  %s23 = inlined_call_operand.vmem [shape: bf16[64,256], index: 23, kind: input, shape index: {}]
  %s24 = inlined_call_operand.vmem [shape: f32[1,256], index: 24, kind: input, shape index: {}]
  %s25 = inlined_call_operand.vmem [shape: f32[8,32], index: 25, kind: output, shape index: {0}]
  %s26 = inlined_call_operand.vmem [shape: f32[8,32], index: 26, kind: output, shape index: {1}]
  %s27 = inlined_call_operand.vmem [shape: f32[8,8], index: 27, kind: output, shape index: {2}]
  %s28 = inlined_call_operand.vmem [shape: f32[8,2], index: 28, kind: output, shape index: {3}]
  %29 = xla_tuple %s25, %s26, %s27, %s28
  %s30 = sld [smem:[#allocation0]]
  $region206: #{decode_one_step.1} parent=0
    _
  %s32 = ssub.s32 1, %s30
  %s33 = scalar_select 0, %s32, %s30
  %v34 = vstv %s19
  %35 = vst [vmem:[#allocation9] sm:$0x1] %v34
  $region1: #{decode_one_step.1} parent=0
    #allocation10 [shape = 'u8[32768]{0}', space=vmem, size = 0x8000, scoped, tag = 'input window, operand 23']
    loop: start=0, step=1, limit=4
    $region2: #{decode_one_step.1} parent=1 // loop_pre_header
      _
    $region3: #{decode_one_step.1} parent=1 // loop_header
      %s37 = sphi 0, %s41
      %p38 = scmp.ge.s32.totalorder %s37, 4
      %s45 = sphi 0, %s45
      %s47 = sphi 0, %s45
      %s48 = sphi 0, %s47
      %s62 = sphi 0, %s48
      %s66 = sphi 0, %s66
      %s68 = sphi 0, %s66
      %s69 = sphi 0, %s68
      %s83 = sphi 0, %s69
      %s87 = sphi 0, %s87
      %s89 = sphi 0, %s87
      %s90 = sphi 0, %s89
      %s104 = sphi 0, %s90
      %s108 = sphi 0, %s108
      %s110 = sphi 0, %s108
      %s111 = sphi 0, %s110
      %s125 = sphi 0, %s111
      %s129 = sphi 0, %s129
      %s131 = sphi 0, %s129
      %s132 = sphi 0, %s131
      %s146 = sphi 0, %s132
      %s150 = sphi 0, %s150
      %s152 = sphi 0, %s150
      %s153 = sphi 0, %s152
      %s167 = sphi 0, %s153
      %s171 = sphi 0, %s171
      %s173 = sphi 0, %s171
      %s174 = sphi 0, %s173
      %s188 = sphi 0, %s174
      %s192 = sphi 0, %s192
      %s194 = sphi 0, %s192
      %s195 = sphi 0, %s194
      %s209 = sphi 0, %s195
      %s213 = sphi 0, %s213
      %s215 = sphi 0, %s213
      %s216 = sphi 0, %s215
      %s230 = sphi 0, %s216
      %s234 = sphi 0, %s234
      %s236 = sphi 0, %s234
      %s237 = sphi 0, %s236
      %s251 = sphi 0, %s237
      %s255 = sphi 0, %s255
      %s257 = sphi 0, %s255
      %s258 = sphi 0, %s257
      %s272 = sphi 0, %s258
      %s276 = sphi 0, %s276
      %s278 = sphi 0, %s276
      %s279 = sphi 0, %s278
      %s293 = sphi 0, %s279
      %s297 = sphi 0, %s297
      %s299 = sphi 0, %s297
      %s300 = sphi 0, %s299
      %s314 = sphi 0, %s300
      %s318 = sphi 0, %s318
      %s320 = sphi 0, %s318
      %s321 = sphi 0, %s320
      %s335 = sphi 0, %s321
      %s339 = sphi 0, %s339
      %s341 = sphi 0, %s339
      %s342 = sphi 0, %s341
      %s356 = sphi 0, %s342
      %s360 = sphi 0, %s360
      %s362 = sphi 0, %s360
      %s363 = sphi 0, %s362
      %s377 = sphi 0, %s363
      %s381 = sphi 0, %s381
      %s383 = sphi 0, %s381
      %s384 = sphi 0, %s383
      %s398 = sphi 0, %s384
      %s402 = sphi 0, %s402
      %s404 = sphi 0, %s402
      %s405 = sphi 0, %s404
      %s419 = sphi 0, %s405
      %s423 = sphi 0, %s423
      %s425 = sphi 0, %s423
      %s426 = sphi 0, %s425
      %s440 = sphi 0, %s426
      %s444 = sphi 0, %s444
      %s446 = sphi 0, %s444
      %s447 = sphi 0, %s446
      %s461 = sphi 0, %s447
      %s465 = sphi 0, %s465
      %s467 = sphi 0, %s465
      %s468 = sphi 0, %s467
      %s482 = sphi 0, %s468
      %s486 = sphi 0, %s486
      %s488 = sphi 0, %s486
      %s489 = sphi 0, %s488
      %s503 = sphi 0, %s489
      %s507 = sphi 0, %s507
      %s509 = sphi 0, %s507
      %s510 = sphi 0, %s509
      %s524 = sphi 0, %s510
      %s530 = sphi 0, %s532
      %s533 = sphi 0, %s530
      %s534 = sphi 0, %s533
      %s550 = sphi 0, %s534
      %s556 = sphi 0, %s558
      %s559 = sphi 0, %s556
      %s560 = sphi 0, %s559
      %s576 = sphi 0, %s560
      %s580 = sphi 0, %s580
      %s582 = sphi 0, %s580
      %s583 = sphi 0, %s582
      %s597 = sphi 0, %s583
      %s601 = sphi 0, %s601
      %s603 = sphi 0, %s601
      %s604 = sphi 0, %s603
      %s618 = sphi 0, %s604
      %s622 = sphi 0, %s622
      %s624 = sphi 0, %s622
      %s625 = sphi 0, %s624
      %s639 = sphi 0, %s625
      %s643 = sphi 0, %s643
      %s645 = sphi 0, %s643
      %s646 = sphi 0, %s645
      %s660 = sphi 0, %s646
    $region4: #{decode_one_step.1} parent=1 // loop_header_branch
      %40 = sbr.rel (%p38) target = $region8
    $region5: #{decode_one_step.1} parent=1 // loop_body
      %s42 = ssub.s32 %s37, 1
      %s43 = ssub.s32 %s37, 2
      %s44 = sadd.s32 %s37, 1
      %s46 = sadd.s32 %s45, 1
      %p49 = scmp.eq.s32.totalorder %s37, 1
      %p50 = scmp.ne.s32.totalorder %s45, %s47
      %p51 = scmp.eq.s32.totalorder %s37, 0
      %p52 = por %p50, %p51
      %p53 = scmp.ne.s32.totalorder %s45, %s47
      %p54 = scmp.eq.s32.totalorder %s42, 1
      %p55 = por %p53, %p54
      %p56 = scmp.ne.s32.totalorder %s47, %s48
      %p57 = scmp.eq.s32.totalorder %s42, 0
      %p58 = por %p56, %p57
      %p59 = scmp.ne.s32.totalorder %s47, %s48
      %p60 = scmp.eq.s32.totalorder %s43, 1
      %p61 = por %p59, %p60
      %p63 = scmp.ne.s32.totalorder %s48, %s62
      %p64 = scmp.eq.s32.totalorder %s43, 0
      %p65 = por %p63, %p64
      %s67 = sadd.s32 %s66, 1
      %p70 = scmp.eq.s32.totalorder %s37, 1
      %p71 = scmp.ne.s32.totalorder %s66, %s68
      %p72 = scmp.eq.s32.totalorder %s37, 0
      %p73 = por %p71, %p72
      %p74 = scmp.ne.s32.totalorder %s66, %s68
      %p75 = scmp.eq.s32.totalorder %s42, 1
      %p76 = por %p74, %p75
      %p77 = scmp.ne.s32.totalorder %s68, %s69
      %p78 = scmp.eq.s32.totalorder %s42, 0
      %p79 = por %p77, %p78
      %p80 = scmp.ne.s32.totalorder %s68, %s69
      %p81 = scmp.eq.s32.totalorder %s43, 1
      %p82 = por %p80, %p81
      %p84 = scmp.ne.s32.totalorder %s69, %s83
      %p85 = scmp.eq.s32.totalorder %s43, 0
      %p86 = por %p84, %p85
      %s88 = sadd.s32 %s87, 1
      %p91 = scmp.eq.s32.totalorder %s37, 1
      %p92 = scmp.ne.s32.totalorder %s87, %s89
      %p93 = scmp.eq.s32.totalorder %s37, 0
      %p94 = por %p92, %p93
      %p95 = scmp.ne.s32.totalorder %s87, %s89
      %p96 = scmp.eq.s32.totalorder %s42, 1
      %p97 = por %p95, %p96
      %p98 = scmp.ne.s32.totalorder %s89, %s90
      %p99 = scmp.eq.s32.totalorder %s42, 0
      %p100 = por %p98, %p99
      %p101 = scmp.ne.s32.totalorder %s89, %s90
      %p102 = scmp.eq.s32.totalorder %s43, 1
      %p103 = por %p101, %p102
      %p105 = scmp.ne.s32.totalorder %s90, %s104
      %p106 = scmp.eq.s32.totalorder %s43, 0
      %p107 = por %p105, %p106
      %s109 = sadd.s32 %s108, 1
      %p112 = scmp.eq.s32.totalorder %s37, 1
      %p113 = scmp.ne.s32.totalorder %s108, %s110
      %p114 = scmp.eq.s32.totalorder %s37, 0
      %p115 = por %p113, %p114
      %p116 = scmp.ne.s32.totalorder %s108, %s110
      %p117 = scmp.eq.s32.totalorder %s42, 1
      %p118 = por %p116, %p117
      %p119 = scmp.ne.s32.totalorder %s110, %s111
      %p120 = scmp.eq.s32.totalorder %s42, 0
      %p121 = por %p119, %p120
      %p122 = scmp.ne.s32.totalorder %s110, %s111
      %p123 = scmp.eq.s32.totalorder %s43, 1
      %p124 = por %p122, %p123
      %p126 = scmp.ne.s32.totalorder %s111, %s125
      %p127 = scmp.eq.s32.totalorder %s43, 0
      %p128 = por %p126, %p127
      %s130 = sadd.s32 %s129, 1
      %p133 = scmp.eq.s32.totalorder %s37, 1
      %p134 = scmp.ne.s32.totalorder %s129, %s131
      %p135 = scmp.eq.s32.totalorder %s37, 0
      %p136 = por %p134, %p135
      %p137 = scmp.ne.s32.totalorder %s129, %s131
      %p138 = scmp.eq.s32.totalorder %s42, 1
      %p139 = por %p137, %p138
      %p140 = scmp.ne.s32.totalorder %s131, %s132
      %p141 = scmp.eq.s32.totalorder %s42, 0
      %p142 = por %p140, %p141
      %p143 = scmp.ne.s32.totalorder %s131, %s132
      %p144 = scmp.eq.s32.totalorder %s43, 1
      %p145 = por %p143, %p144
      %p147 = scmp.ne.s32.totalorder %s132, %s146
      %p148 = scmp.eq.s32.totalorder %s43, 0
      %p149 = por %p147, %p148
      %s151 = sadd.s32 %s150, 1
      %p154 = scmp.eq.s32.totalorder %s37, 1
      %p155 = scmp.ne.s32.totalorder %s150, %s152
      %p156 = scmp.eq.s32.totalorder %s37, 0
      %p157 = por %p155, %p156
      %p158 = scmp.ne.s32.totalorder %s150, %s152
      %p159 = scmp.eq.s32.totalorder %s42, 1
      %p160 = por %p158, %p159
      %p161 = scmp.ne.s32.totalorder %s152, %s153
      %p162 = scmp.eq.s32.totalorder %s42, 0
      %p163 = por %p161, %p162
      %p164 = scmp.ne.s32.totalorder %s152, %s153
      %p165 = scmp.eq.s32.totalorder %s43, 1
      %p166 = por %p164, %p165
      %p168 = scmp.ne.s32.totalorder %s153, %s167
      %p169 = scmp.eq.s32.totalorder %s43, 0
      %p170 = por %p168, %p169
      %s172 = sadd.s32 %s171, 1
      %p175 = scmp.eq.s32.totalorder %s37, 1
      %p176 = scmp.ne.s32.totalorder %s171, %s173
      %p177 = scmp.eq.s32.totalorder %s37, 0
      %p178 = por %p176, %p177
      %p179 = scmp.ne.s32.totalorder %s171, %s173
      %p180 = scmp.eq.s32.totalorder %s42, 1
      %p181 = por %p179, %p180
      %p182 = scmp.ne.s32.totalorder %s173, %s174
      %p183 = scmp.eq.s32.totalorder %s42, 0
      %p184 = por %p182, %p183
      %p185 = scmp.ne.s32.totalorder %s173, %s174
      %p186 = scmp.eq.s32.totalorder %s43, 1
      %p187 = por %p185, %p186
      %p189 = scmp.ne.s32.totalorder %s174, %s188
      %p190 = scmp.eq.s32.totalorder %s43, 0
      %p191 = por %p189, %p190
      %s193 = sadd.s32 %s192, 1
      %p196 = scmp.eq.s32.totalorder %s37, 1
      %p197 = scmp.ne.s32.totalorder %s192, %s194
      %p198 = scmp.eq.s32.totalorder %s37, 0
      %p199 = por %p197, %p198
      %p200 = scmp.ne.s32.totalorder %s192, %s194
      %p201 = scmp.eq.s32.totalorder %s42, 1
      %p202 = por %p200, %p201
      %p203 = scmp.ne.s32.totalorder %s194, %s195
      %p204 = scmp.eq.s32.totalorder %s42, 0
      %p205 = por %p203, %p204
      %p206 = scmp.ne.s32.totalorder %s194, %s195
      %p207 = scmp.eq.s32.totalorder %s43, 1
      %p208 = por %p206, %p207
      %p210 = scmp.ne.s32.totalorder %s195, %s209
      %p211 = scmp.eq.s32.totalorder %s43, 0
      %p212 = por %p210, %p211
      %s214 = sadd.s32 %s213, 1
      %p217 = scmp.eq.s32.totalorder %s37, 1
      %p218 = scmp.ne.s32.totalorder %s213, %s215
      %p219 = scmp.eq.s32.totalorder %s37, 0
      %p220 = por %p218, %p219
      %p221 = scmp.ne.s32.totalorder %s213, %s215
      %p222 = scmp.eq.s32.totalorder %s42, 1
      %p223 = por %p221, %p222
      %p224 = scmp.ne.s32.totalorder %s215, %s216
      %p225 = scmp.eq.s32.totalorder %s42, 0
      %p226 = por %p224, %p225
      %p227 = scmp.ne.s32.totalorder %s215, %s216
      %p228 = scmp.eq.s32.totalorder %s43, 1
      %p229 = por %p227, %p228
      %p231 = scmp.ne.s32.totalorder %s216, %s230
      %p232 = scmp.eq.s32.totalorder %s43, 0
      %p233 = por %p231, %p232
      %s235 = sadd.s32 %s234, 1
      %p238 = scmp.eq.s32.totalorder %s37, 1
      %p239 = scmp.ne.s32.totalorder %s234, %s236
      %p240 = scmp.eq.s32.totalorder %s37, 0
      %p241 = por %p239, %p240
      %p242 = scmp.ne.s32.totalorder %s234, %s236
      %p243 = scmp.eq.s32.totalorder %s42, 1
      %p244 = por %p242, %p243
      %p245 = scmp.ne.s32.totalorder %s236, %s237
      %p246 = scmp.eq.s32.totalorder %s42, 0
      %p247 = por %p245, %p246
      %p248 = scmp.ne.s32.totalorder %s236, %s237
      %p249 = scmp.eq.s32.totalorder %s43, 1
      %p250 = por %p248, %p249
      %p252 = scmp.ne.s32.totalorder %s237, %s251
      %p253 = scmp.eq.s32.totalorder %s43, 0
      %p254 = por %p252, %p253
      %s256 = sadd.s32 %s255, 1
      %p259 = scmp.eq.s32.totalorder %s37, 1
      %p260 = scmp.ne.s32.totalorder %s255, %s257
      %p261 = scmp.eq.s32.totalorder %s37, 0
      %p262 = por %p260, %p261
      %p263 = scmp.ne.s32.totalorder %s255, %s257
      %p264 = scmp.eq.s32.totalorder %s42, 1
      %p265 = por %p263, %p264
      %p266 = scmp.ne.s32.totalorder %s257, %s258
      %p267 = scmp.eq.s32.totalorder %s42, 0
      %p268 = por %p266, %p267
      %p269 = scmp.ne.s32.totalorder %s257, %s258
      %p270 = scmp.eq.s32.totalorder %s43, 1
      %p271 = por %p269, %p270
      %p273 = scmp.ne.s32.totalorder %s258, %s272
      %p274 = scmp.eq.s32.totalorder %s43, 0
      %p275 = por %p273, %p274
      %s277 = sadd.s32 %s276, 1
      %p280 = scmp.eq.s32.totalorder %s37, 1
      %p281 = scmp.ne.s32.totalorder %s276, %s278
      %p282 = scmp.eq.s32.totalorder %s37, 0
      %p283 = por %p281, %p282
      %p284 = scmp.ne.s32.totalorder %s276, %s278
      %p285 = scmp.eq.s32.totalorder %s42, 1
      %p286 = por %p284, %p285
      %p287 = scmp.ne.s32.totalorder %s278, %s279
      %p288 = scmp.eq.s32.totalorder %s42, 0
      %p289 = por %p287, %p288
      %p290 = scmp.ne.s32.totalorder %s278, %s279
      %p291 = scmp.eq.s32.totalorder %s43, 1
      %p292 = por %p290, %p291
      %p294 = scmp.ne.s32.totalorder %s279, %s293
      %p295 = scmp.eq.s32.totalorder %s43, 0
      %p296 = por %p294, %p295
      %s298 = sadd.s32 %s297, 1
      %p301 = scmp.eq.s32.totalorder %s37, 1
      %p302 = scmp.ne.s32.totalorder %s297, %s299
      %p303 = scmp.eq.s32.totalorder %s37, 0
      %p304 = por %p302, %p303
      %p305 = scmp.ne.s32.totalorder %s297, %s299
      %p306 = scmp.eq.s32.totalorder %s42, 1
      %p307 = por %p305, %p306
      %p308 = scmp.ne.s32.totalorder %s299, %s300
      %p309 = scmp.eq.s32.totalorder %s42, 0
      %p310 = por %p308, %p309
      %p311 = scmp.ne.s32.totalorder %s299, %s300
      %p312 = scmp.eq.s32.totalorder %s43, 1
      %p313 = por %p311, %p312
      %p315 = scmp.ne.s32.totalorder %s300, %s314
      %p316 = scmp.eq.s32.totalorder %s43, 0
      %p317 = por %p315, %p316
      %s319 = sadd.s32 %s318, 1
      %p322 = scmp.eq.s32.totalorder %s37, 1
      %p323 = scmp.ne.s32.totalorder %s318, %s320
      %p324 = scmp.eq.s32.totalorder %s37, 0
      %p325 = por %p323, %p324
      %p326 = scmp.ne.s32.totalorder %s318, %s320
      %p327 = scmp.eq.s32.totalorder %s42, 1
      %p328 = por %p326, %p327
      %p329 = scmp.ne.s32.totalorder %s320, %s321
      %p330 = scmp.eq.s32.totalorder %s42, 0
      %p331 = por %p329, %p330
      %p332 = scmp.ne.s32.totalorder %s320, %s321
      %p333 = scmp.eq.s32.totalorder %s43, 1
      %p334 = por %p332, %p333
      %p336 = scmp.ne.s32.totalorder %s321, %s335
      %p337 = scmp.eq.s32.totalorder %s43, 0
      %p338 = por %p336, %p337
      %s340 = sadd.s32 %s339, 1
      %p343 = scmp.eq.s32.totalorder %s37, 1
      %p344 = scmp.ne.s32.totalorder %s339, %s341
      %p345 = scmp.eq.s32.totalorder %s37, 0
      %p346 = por %p344, %p345
      %p347 = scmp.ne.s32.totalorder %s339, %s341
      %p348 = scmp.eq.s32.totalorder %s42, 1
      %p349 = por %p347, %p348
      %p350 = scmp.ne.s32.totalorder %s341, %s342
      %p351 = scmp.eq.s32.totalorder %s42, 0
      %p352 = por %p350, %p351
      %p353 = scmp.ne.s32.totalorder %s341, %s342
      %p354 = scmp.eq.s32.totalorder %s43, 1
      %p355 = por %p353, %p354
      %p357 = scmp.ne.s32.totalorder %s342, %s356
      %p358 = scmp.eq.s32.totalorder %s43, 0
      %p359 = por %p357, %p358
      %s361 = sadd.s32 %s360, 1
      %p364 = scmp.eq.s32.totalorder %s37, 1
      %p365 = scmp.ne.s32.totalorder %s360, %s362
      %p366 = scmp.eq.s32.totalorder %s37, 0
      %p367 = por %p365, %p366
      %p368 = scmp.ne.s32.totalorder %s360, %s362
      %p369 = scmp.eq.s32.totalorder %s42, 1
      %p370 = por %p368, %p369
      %p371 = scmp.ne.s32.totalorder %s362, %s363
      %p372 = scmp.eq.s32.totalorder %s42, 0
      %p373 = por %p371, %p372
      %p374 = scmp.ne.s32.totalorder %s362, %s363
      %p375 = scmp.eq.s32.totalorder %s43, 1
      %p376 = por %p374, %p375
      %p378 = scmp.ne.s32.totalorder %s363, %s377
      %p379 = scmp.eq.s32.totalorder %s43, 0
      %p380 = por %p378, %p379
      %s382 = sadd.s32 %s381, 1
      %p385 = scmp.eq.s32.totalorder %s37, 1
      %p386 = scmp.ne.s32.totalorder %s381, %s383
      %p387 = scmp.eq.s32.totalorder %s37, 0
      %p388 = por %p386, %p387
      %p389 = scmp.ne.s32.totalorder %s381, %s383
      %p390 = scmp.eq.s32.totalorder %s42, 1
      %p391 = por %p389, %p390
      %p392 = scmp.ne.s32.totalorder %s383, %s384
      %p393 = scmp.eq.s32.totalorder %s42, 0
      %p394 = por %p392, %p393
      %p395 = scmp.ne.s32.totalorder %s383, %s384
      %p396 = scmp.eq.s32.totalorder %s43, 1
      %p397 = por %p395, %p396
      %p399 = scmp.ne.s32.totalorder %s384, %s398
      %p400 = scmp.eq.s32.totalorder %s43, 0
      %p401 = por %p399, %p400
      %s403 = sadd.s32 %s402, 1
      %p406 = scmp.eq.s32.totalorder %s37, 1
      %p407 = scmp.ne.s32.totalorder %s402, %s404
      %p408 = scmp.eq.s32.totalorder %s37, 0
      %p409 = por %p407, %p408
      %p410 = scmp.ne.s32.totalorder %s402, %s404
      %p411 = scmp.eq.s32.totalorder %s42, 1
      %p412 = por %p410, %p411
      %p413 = scmp.ne.s32.totalorder %s404, %s405
      %p414 = scmp.eq.s32.totalorder %s42, 0
      %p415 = por %p413, %p414
      %p416 = scmp.ne.s32.totalorder %s404, %s405
      %p417 = scmp.eq.s32.totalorder %s43, 1
      %p418 = por %p416, %p417
      %p420 = scmp.ne.s32.totalorder %s405, %s419
      %p421 = scmp.eq.s32.totalorder %s43, 0
      %p422 = por %p420, %p421
      %s424 = sadd.s32 %s423, 1
      %p427 = scmp.eq.s32.totalorder %s37, 1
      %p428 = scmp.ne.s32.totalorder %s423, %s425
      %p429 = scmp.eq.s32.totalorder %s37, 0
      %p430 = por %p428, %p429
      %p431 = scmp.ne.s32.totalorder %s423, %s425
      %p432 = scmp.eq.s32.totalorder %s42, 1
      %p433 = por %p431, %p432
      %p434 = scmp.ne.s32.totalorder %s425, %s426
      %p435 = scmp.eq.s32.totalorder %s42, 0
      %p436 = por %p434, %p435
      %p437 = scmp.ne.s32.totalorder %s425, %s426
      %p438 = scmp.eq.s32.totalorder %s43, 1
      %p439 = por %p437, %p438
      %p441 = scmp.ne.s32.totalorder %s426, %s440
      %p442 = scmp.eq.s32.totalorder %s43, 0
      %p443 = por %p441, %p442
      %s445 = sadd.s32 %s444, 1
      %p448 = scmp.eq.s32.totalorder %s37, 1
      %p449 = scmp.ne.s32.totalorder %s444, %s446
      %p450 = scmp.eq.s32.totalorder %s37, 0
      %p451 = por %p449, %p450
      %p452 = scmp.ne.s32.totalorder %s444, %s446
      %p453 = scmp.eq.s32.totalorder %s42, 1
      %p454 = por %p452, %p453
      %p455 = scmp.ne.s32.totalorder %s446, %s447
      %p456 = scmp.eq.s32.totalorder %s42, 0
      %p457 = por %p455, %p456
      %p458 = scmp.ne.s32.totalorder %s446, %s447
      %p459 = scmp.eq.s32.totalorder %s43, 1
      %p460 = por %p458, %p459
      %p462 = scmp.ne.s32.totalorder %s447, %s461
      %p463 = scmp.eq.s32.totalorder %s43, 0
      %p464 = por %p462, %p463
      %s466 = sadd.s32 %s465, 1
      %p469 = scmp.eq.s32.totalorder %s37, 1
      %p470 = scmp.ne.s32.totalorder %s465, %s467
      %p471 = scmp.eq.s32.totalorder %s37, 0
      %p472 = por %p470, %p471
      %p473 = scmp.ne.s32.totalorder %s465, %s467
      %p474 = scmp.eq.s32.totalorder %s42, 1
      %p475 = por %p473, %p474
      %p476 = scmp.ne.s32.totalorder %s467, %s468
      %p477 = scmp.eq.s32.totalorder %s42, 0
      %p478 = por %p476, %p477
      %p479 = scmp.ne.s32.totalorder %s467, %s468
      %p480 = scmp.eq.s32.totalorder %s43, 1
      %p481 = por %p479, %p480
      %p483 = scmp.ne.s32.totalorder %s468, %s482
      %p484 = scmp.eq.s32.totalorder %s43, 0
      %p485 = por %p483, %p484
      %s487 = sadd.s32 %s486, 1
      %p490 = scmp.eq.s32.totalorder %s37, 1
      %p491 = scmp.ne.s32.totalorder %s486, %s488
      %p492 = scmp.eq.s32.totalorder %s37, 0
      %p493 = por %p491, %p492
      %p494 = scmp.ne.s32.totalorder %s486, %s488
      %p495 = scmp.eq.s32.totalorder %s42, 1
      %p496 = por %p494, %p495
      %p497 = scmp.ne.s32.totalorder %s488, %s489
      %p498 = scmp.eq.s32.totalorder %s42, 0
      %p499 = por %p497, %p498
      %p500 = scmp.ne.s32.totalorder %s488, %s489
      %p501 = scmp.eq.s32.totalorder %s43, 1
      %p502 = por %p500, %p501
      %p504 = scmp.ne.s32.totalorder %s489, %s503
      %p505 = scmp.eq.s32.totalorder %s43, 0
      %p506 = por %p504, %p505
      %s508 = sadd.s32 %s507, 1
      %p511 = scmp.eq.s32.totalorder %s37, 1
      %p512 = scmp.ne.s32.totalorder %s507, %s509
      %p513 = scmp.eq.s32.totalorder %s37, 0
      %p514 = por %p512, %p513
      %p515 = scmp.ne.s32.totalorder %s507, %s509
      %p516 = scmp.eq.s32.totalorder %s42, 1
      %p517 = por %p515, %p516
      %p518 = scmp.ne.s32.totalorder %s509, %s510
      %p519 = scmp.eq.s32.totalorder %s42, 0
      %p520 = por %p518, %p519
      %p521 = scmp.ne.s32.totalorder %s509, %s510
      %p522 = scmp.eq.s32.totalorder %s43, 1
      %p523 = por %p521, %p522
      %p525 = scmp.ne.s32.totalorder %s510, %s524
      %p526 = scmp.eq.s32.totalorder %s43, 0
      %p527 = por %p525, %p526
      %s528 = ssub.s32 %s37, %s44
      %p529 = scmp.eq.s32.totalorder %s528, 0
      %s531 = sadd.s32 %s530, 1
      %s532 = scalar_select %p529, %s530, %s531
      %p535 = pneg %p529
      %p536 = scmp.eq.s32.totalorder %s37, 1
      %p537 = por %p535, %p536
      %p538 = scmp.ne.s32.totalorder %s530, %s533
      %p539 = scmp.eq.s32.totalorder %s37, 0
      %p540 = por %p538, %p539
      %p541 = scmp.ne.s32.totalorder %s530, %s533
      %p542 = scmp.eq.s32.totalorder %s42, 1
      %p543 = por %p541, %p542
      %p544 = scmp.ne.s32.totalorder %s533, %s534
      %p545 = scmp.eq.s32.totalorder %s42, 0
      %p546 = por %p544, %p545
      %p547 = scmp.ne.s32.totalorder %s533, %s534
      %p548 = scmp.eq.s32.totalorder %s43, 1
      %p549 = por %p547, %p548
      %p551 = scmp.ne.s32.totalorder %s534, %s550
      %p552 = scmp.eq.s32.totalorder %s43, 0
      %p553 = por %p551, %p552
      %s554 = ssub.s32 %s37, %s44
      %p555 = scmp.eq.s32.totalorder %s554, 0
      %s557 = sadd.s32 %s556, 1
      %s558 = scalar_select %p555, %s556, %s557
      %p561 = pneg %p555
      %p562 = scmp.eq.s32.totalorder %s37, 1
      %p563 = por %p561, %p562
      %p564 = scmp.ne.s32.totalorder %s556, %s559
      %p565 = scmp.eq.s32.totalorder %s37, 0
      %p566 = por %p564, %p565
      %p567 = scmp.ne.s32.totalorder %s556, %s559
      %p568 = scmp.eq.s32.totalorder %s42, 1
      %p569 = por %p567, %p568
      %p570 = scmp.ne.s32.totalorder %s559, %s560
      %p571 = scmp.eq.s32.totalorder %s42, 0
      %p572 = por %p570, %p571
      %p573 = scmp.ne.s32.totalorder %s559, %s560
      %p574 = scmp.eq.s32.totalorder %s43, 1
      %p575 = por %p573, %p574
      %p577 = scmp.ne.s32.totalorder %s560, %s576
      %p578 = scmp.eq.s32.totalorder %s43, 0
      %p579 = por %p577, %p578
      %s581 = sadd.s32 %s580, 1
      %p584 = scmp.eq.s32.totalorder %s37, 1
      %p585 = scmp.ne.s32.totalorder %s580, %s582
      %p586 = scmp.eq.s32.totalorder %s37, 0
      %p587 = por %p585, %p586
      %p588 = scmp.ne.s32.totalorder %s580, %s582
      %p589 = scmp.eq.s32.totalorder %s42, 1
      %p590 = por %p588, %p589
      %p591 = scmp.ne.s32.totalorder %s582, %s583
      %p592 = scmp.eq.s32.totalorder %s42, 0
      %p593 = por %p591, %p592
      %p594 = scmp.ne.s32.totalorder %s582, %s583
      %p595 = scmp.eq.s32.totalorder %s43, 1
      %p596 = por %p594, %p595
      %p598 = scmp.ne.s32.totalorder %s583, %s597
      %p599 = scmp.eq.s32.totalorder %s43, 0
      %p600 = por %p598, %p599
      %s602 = sadd.s32 %s601, 1
      %p605 = scmp.eq.s32.totalorder %s37, 1
      %p606 = scmp.ne.s32.totalorder %s601, %s603
      %p607 = scmp.eq.s32.totalorder %s37, 0
      %p608 = por %p606, %p607
      %p609 = scmp.ne.s32.totalorder %s601, %s603
      %p610 = scmp.eq.s32.totalorder %s42, 1
      %p611 = por %p609, %p610
      %p612 = scmp.ne.s32.totalorder %s603, %s604
      %p613 = scmp.eq.s32.totalorder %s42, 0
      %p614 = por %p612, %p613
      %p615 = scmp.ne.s32.totalorder %s603, %s604
      %p616 = scmp.eq.s32.totalorder %s43, 1
      %p617 = por %p615, %p616
      %p619 = scmp.ne.s32.totalorder %s604, %s618
      %p620 = scmp.eq.s32.totalorder %s43, 0
      %p621 = por %p619, %p620
      %s623 = sadd.s32 %s622, 1
      %p626 = scmp.eq.s32.totalorder %s37, 1
      %p627 = scmp.ne.s32.totalorder %s622, %s624
      %p628 = scmp.eq.s32.totalorder %s37, 0
      %p629 = por %p627, %p628
      %p630 = scmp.ne.s32.totalorder %s622, %s624
      %p631 = scmp.eq.s32.totalorder %s42, 1
      %p632 = por %p630, %p631
      %p633 = scmp.ne.s32.totalorder %s624, %s625
      %p634 = scmp.eq.s32.totalorder %s42, 0
      %p635 = por %p633, %p634
      %p636 = scmp.ne.s32.totalorder %s624, %s625
      %p637 = scmp.eq.s32.totalorder %s43, 1
      %p638 = por %p636, %p637
      %p640 = scmp.ne.s32.totalorder %s625, %s639
      %p641 = scmp.eq.s32.totalorder %s43, 0
      %p642 = por %p640, %p641
      %s644 = sadd.s32 %s643, 1
      %p647 = scmp.eq.s32.totalorder %s37, 1
      %p648 = scmp.ne.s32.totalorder %s643, %s645
      %p649 = scmp.eq.s32.totalorder %s37, 0
      %p650 = por %p648, %p649
      %p651 = scmp.ne.s32.totalorder %s643, %s645
      %p652 = scmp.eq.s32.totalorder %s42, 1
      %p653 = por %p651, %p652
      %p654 = scmp.ne.s32.totalorder %s645, %s646
      %p655 = scmp.eq.s32.totalorder %s42, 0
      %p656 = por %p654, %p655
      %p657 = scmp.ne.s32.totalorder %s645, %s646
      %p658 = scmp.eq.s32.totalorder %s43, 1
      %p659 = por %p657, %p658
      %p661 = scmp.ne.s32.totalorder %s646, %s660
      %p662 = scmp.eq.s32.totalorder %s43, 0
      %p663 = por %p661, %p662
      %p664 = scmp.le.s32.totalorder 1, %s37
      %p665 = scmp.lt.s32.totalorder %s37, 3
      %p666 = pnand %p664, %p665
      %p667 = pneg %p666
      // Predicated region
      $region9: #{decode_one_step.1} parent=5 // pred_check
        _
      $region10: #{decode_one_step.1} parent=5 // pred_check_branch
        %669 = sbr.rel (%p666) target = $region12
      $region11: #{decode_one_step.1} parent=5 // pred_region
        %s670 = ssub.s32 %s37, 1
        // Predicated region
        $region13: #{decode_one_step.1} parent=11 // pred_check
          %p671 = pneg %p58
        $region14: #{decode_one_step.1} parent=11 // pred_check_branch
          %673 = sbr.rel (%p671) target = $region16
        $region15: #{decode_one_step.1} parent=11 // pred_region
          _
        $region16: #{decode_one_step.1} parent=11 // pred_fallthru
          _
        // Predicated region
        $region17: #{decode_one_step.1} parent=11 // pred_check
          %p674 = pneg %p79
        $region18: #{decode_one_step.1} parent=11 // pred_check_branch
          %676 = sbr.rel (%p674) target = $region20
        $region19: #{decode_one_step.1} parent=11 // pred_region
          _
        $region20: #{decode_one_step.1} parent=11 // pred_fallthru
          _
        // Predicated region
        $region21: #{decode_one_step.1} parent=11 // pred_check
          %p677 = pneg %p100
        $region22: #{decode_one_step.1} parent=11 // pred_check_branch
          %679 = sbr.rel (%p677) target = $region24
        $region23: #{decode_one_step.1} parent=11 // pred_region
          _
        $region24: #{decode_one_step.1} parent=11 // pred_fallthru
          _
        // Predicated region
        $region25: #{decode_one_step.1} parent=11 // pred_check
          %p680 = pneg %p121
        $region26: #{decode_one_step.1} parent=11 // pred_check_branch
          %682 = sbr.rel (%p680) target = $region28
        $region27: #{decode_one_step.1} parent=11 // pred_region
          _
        $region28: #{decode_one_step.1} parent=11 // pred_fallthru
          _
        // Predicated region
        $region29: #{decode_one_step.1} parent=11 // pred_check
          %p683 = pneg %p142
        $region30: #{decode_one_step.1} parent=11 // pred_check_branch
          %685 = sbr.rel (%p683) target = $region32
        $region31: #{decode_one_step.1} parent=11 // pred_region
          _
        $region32: #{decode_one_step.1} parent=11 // pred_fallthru
          _
        // Predicated region
        $region33: #{decode_one_step.1} parent=11 // pred_check
          %p686 = pneg %p163
        $region34: #{decode_one_step.1} parent=11 // pred_check_branch
          %688 = sbr.rel (%p686) target = $region36
        $region35: #{decode_one_step.1} parent=11 // pred_region
          _
        $region36: #{decode_one_step.1} parent=11 // pred_fallthru
          _
        // Predicated region
        $region37: #{decode_one_step.1} parent=11 // pred_check
          %p689 = pneg %p184
        $region38: #{decode_one_step.1} parent=11 // pred_check_branch
          %691 = sbr.rel (%p689) target = $region40
        $region39: #{decode_one_step.1} parent=11 // pred_region
          _
        $region40: #{decode_one_step.1} parent=11 // pred_fallthru
          _
        // Predicated region
        $region41: #{decode_one_step.1} parent=11 // pred_check
          %p692 = pneg %p205
        $region42: #{decode_one_step.1} parent=11 // pred_check_branch
          %694 = sbr.rel (%p692) target = $region44
        $region43: #{decode_one_step.1} parent=11 // pred_region
          _
        $region44: #{decode_one_step.1} parent=11 // pred_fallthru
          _
        // Predicated region
        $region45: #{decode_one_step.1} parent=11 // pred_check
          %p695 = pneg %p226
        $region46: #{decode_one_step.1} parent=11 // pred_check_branch
          %697 = sbr.rel (%p695) target = $region48
        $region47: #{decode_one_step.1} parent=11 // pred_region
          _
        $region48: #{decode_one_step.1} parent=11 // pred_fallthru
          _
        // Predicated region
        $region49: #{decode_one_step.1} parent=11 // pred_check
          %p698 = pneg %p247
        $region50: #{decode_one_step.1} parent=11 // pred_check_branch
          %700 = sbr.rel (%p698) target = $region52
        $region51: #{decode_one_step.1} parent=11 // pred_region
          _
        $region52: #{decode_one_step.1} parent=11 // pred_fallthru
          _
        // Predicated region
        $region53: #{decode_one_step.1} parent=11 // pred_check
          %p701 = pneg %p268
        $region54: #{decode_one_step.1} parent=11 // pred_check_branch
          %703 = sbr.rel (%p701) target = $region56
        $region55: #{decode_one_step.1} parent=11 // pred_region
          _
        $region56: #{decode_one_step.1} parent=11 // pred_fallthru
          _
        // Predicated region
        $region57: #{decode_one_step.1} parent=11 // pred_check
          %p704 = pneg %p289
        $region58: #{decode_one_step.1} parent=11 // pred_check_branch
          %706 = sbr.rel (%p704) target = $region60
        $region59: #{decode_one_step.1} parent=11 // pred_region
          _
        $region60: #{decode_one_step.1} parent=11 // pred_fallthru
          _
        // Predicated region
        $region61: #{decode_one_step.1} parent=11 // pred_check
          %p707 = pneg %p310
        $region62: #{decode_one_step.1} parent=11 // pred_check_branch
          %709 = sbr.rel (%p707) target = $region64
        $region63: #{decode_one_step.1} parent=11 // pred_region
          _
        $region64: #{decode_one_step.1} parent=11 // pred_fallthru
          _
        // Predicated region
        $region65: #{decode_one_step.1} parent=11 // pred_check
          %p710 = pneg %p331
        $region66: #{decode_one_step.1} parent=11 // pred_check_branch
          %712 = sbr.rel (%p710) target = $region68
        $region67: #{decode_one_step.1} parent=11 // pred_region
          _
        $region68: #{decode_one_step.1} parent=11 // pred_fallthru
          _
        // Predicated region
        $region69: #{decode_one_step.1} parent=11 // pred_check
          %p713 = pneg %p352
        $region70: #{decode_one_step.1} parent=11 // pred_check_branch
          %715 = sbr.rel (%p713) target = $region72
        $region71: #{decode_one_step.1} parent=11 // pred_region
          _
        $region72: #{decode_one_step.1} parent=11 // pred_fallthru
          _
        // Predicated region
        $region73: #{decode_one_step.1} parent=11 // pred_check
          %p716 = pneg %p373
        $region74: #{decode_one_step.1} parent=11 // pred_check_branch
          %718 = sbr.rel (%p716) target = $region76
        $region75: #{decode_one_step.1} parent=11 // pred_region
          _
        $region76: #{decode_one_step.1} parent=11 // pred_fallthru
          _
        // Predicated region
        $region77: #{decode_one_step.1} parent=11 // pred_check
          %p719 = pneg %p394
        $region78: #{decode_one_step.1} parent=11 // pred_check_branch
          %721 = sbr.rel (%p719) target = $region80
        $region79: #{decode_one_step.1} parent=11 // pred_region
          _
        $region80: #{decode_one_step.1} parent=11 // pred_fallthru
          _
        // Predicated region
        $region81: #{decode_one_step.1} parent=11 // pred_check
          %p722 = pneg %p415
        $region82: #{decode_one_step.1} parent=11 // pred_check_branch
          %724 = sbr.rel (%p722) target = $region84
        $region83: #{decode_one_step.1} parent=11 // pred_region
          _
        $region84: #{decode_one_step.1} parent=11 // pred_fallthru
          _
        // Predicated region
        $region85: #{decode_one_step.1} parent=11 // pred_check
          %p725 = pneg %p436
        $region86: #{decode_one_step.1} parent=11 // pred_check_branch
          %727 = sbr.rel (%p725) target = $region88
        $region87: #{decode_one_step.1} parent=11 // pred_region
          _
        $region88: #{decode_one_step.1} parent=11 // pred_fallthru
          _
        // Predicated region
        $region89: #{decode_one_step.1} parent=11 // pred_check
          %p728 = pneg %p457
        $region90: #{decode_one_step.1} parent=11 // pred_check_branch
          %730 = sbr.rel (%p728) target = $region92
        $region91: #{decode_one_step.1} parent=11 // pred_region
          _
        $region92: #{decode_one_step.1} parent=11 // pred_fallthru
          _
        // Predicated region
        $region93: #{decode_one_step.1} parent=11 // pred_check
          %p731 = pneg %p478
        $region94: #{decode_one_step.1} parent=11 // pred_check_branch
          %733 = sbr.rel (%p731) target = $region96
        $region95: #{decode_one_step.1} parent=11 // pred_region
          _
        $region96: #{decode_one_step.1} parent=11 // pred_fallthru
          _
        // Predicated region
        $region97: #{decode_one_step.1} parent=11 // pred_check
          %p734 = pneg %p499
        $region98: #{decode_one_step.1} parent=11 // pred_check_branch
          %736 = sbr.rel (%p734) target = $region100
        $region99: #{decode_one_step.1} parent=11 // pred_region
          _
        $region100: #{decode_one_step.1} parent=11 // pred_fallthru
          _
        // Predicated region
        $region101: #{decode_one_step.1} parent=11 // pred_check
          %p737 = pneg %p520
        $region102: #{decode_one_step.1} parent=11 // pred_check_branch
          %739 = sbr.rel (%p737) target = $region104
        $region103: #{decode_one_step.1} parent=11 // pred_region
          _
        $region104: #{decode_one_step.1} parent=11 // pred_fallthru
          _
      $region12: #{decode_one_step.1} parent=5 // pred_fallthru
        _
      %p740 = scmp.lt.s32.totalorder %s37, 2
      // Predicated region
      $region105: #{decode_one_step.1} parent=5 // pred_check
        %p741 = pneg %p740
      $region106: #{decode_one_step.1} parent=5 // pred_check_branch
        %743 = sbr.rel (%p741) target = $region108
      $region107: #{decode_one_step.1} parent=5 // pred_region
        // Predicated region
        $region109: #{decode_one_step.1} parent=107 // pred_check
          %p744 = pneg %p540
        $region110: #{decode_one_step.1} parent=107 // pred_check_branch
          %746 = sbr.rel (%p744) target = $region112
        $region111: #{decode_one_step.1} parent=107 // pred_region
          %s747 = sand.u32 %s530, 1
          %s748 = sand.u32 %s530, 1
          %s749 = smul.addr %s748, 32
          %s750 = scalar_lea.vmem [#allocation10], %s749
          %s751 = smul.addr %s37, 4
          %s752 = scalar_lea.vmem %s23, %s751
          // Predicated region
          $region113: #{decode_one_step.1} parent=111 // pred_check
            _
          $region114: #{decode_one_step.1} parent=111 // pred_check_branch
            %754 = sbr.rel (0) target = $region116
          $region115: #{decode_one_step.1} parent=111 // pred_region
            // Predicated region
            $region117: #{decode_one_step.1} parent=115 // pred_check
              _
            $region118: #{decode_one_step.1} parent=115 // pred_check_branch
              %756 = sbr.rel target = $region120
            $region119: #{decode_one_step.1} parent=115 // pred_region
              // Predicated region
              $region132: #{decode_one_step.1} parent=119 // pred_check
                _
              $region133: #{decode_one_step.1} parent=119 // pred_check_branch
                %785 = sbr.rel (0) target = $region135
              $region134: #{decode_one_step.1} parent=119 // pred_region
                loop: start=0, step=1, limit=1
                $region136: #{decode_one_step.1} parent=134 // loop_pre_header
                  _
                $region137: #{decode_one_step.1} parent=134 // loop_header
                  %s787 = sphi 0, %s791
                  %p788 = scmp.ge.s32.totalorder %s787, 1
                  %s792 = sphi %s752, %s752
                  %s793 = sphi %s750, %s750
                $region138: #{decode_one_step.1} parent=134 // loop_header_branch
                  %790 = sbr.rel (%p788) target = $region142
                $region139: #{decode_one_step.1} parent=134 // loop_body
                  _
                $region140: #{decode_one_step.1} parent=134 // loop_footer
                  %s791 = sadd.s32 1, %s787
                $region141: #{decode_one_step.1} parent=134 // loop_footer_branch
                  %786 = sbr.rel target = $region137
                $region142: #{decode_one_step.1} parent=134 // loop_exit
                  _
                loop: start=0, step=1, limit=1
                $region143: #{decode_one_step.1} parent=134 // loop_pre_header
                  _
                $region144: #{decode_one_step.1} parent=134 // loop_header
                  %s796 = sphi 0, %s800
                  %p797 = scmp.ge.s32.totalorder %s796, 1
                  %s801 = sphi %s752, %s752
                  %s802 = sphi %s750, %s750
                $region145: #{decode_one_step.1} parent=134 // loop_header_branch
                  %799 = sbr.rel (%p797) target = $region149
                $region146: #{decode_one_step.1} parent=134 // loop_body
                  %v803 = vld [vmem:[%s801] sm:$0xf]
                  %804 = vst [vmem:[%s802] sm:$0xf] %v803
                  %v805 = vld [vmem:[%s801 + $0x8] sm:$0xf]
                  %806 = vst [vmem:[%s802 + $0x4] sm:$0xf] %v805
                  %v807 = vld [vmem:[%s801 + $0x10] sm:$0xf]
                  %808 = vst [vmem:[%s802 + $0x8] sm:$0xf] %v807
                  %v809 = vld [vmem:[%s801 + $0x18] sm:$0xf]
                  %810 = vst [vmem:[%s802 + $0xc] sm:$0xf] %v809
                  %v811 = vld [vmem:[%s801 + $0x20] sm:$0xf]
                  %812 = vst [vmem:[%s802 + $0x10] sm:$0xf] %v811
                  %v813 = vld [vmem:[%s801 + $0x28] sm:$0xf]
                  %814 = vst [vmem:[%s802 + $0x14] sm:$0xf] %v813
                  %v815 = vld [vmem:[%s801 + $0x30] sm:$0xf]
                  %816 = vst [vmem:[%s802 + $0x18] sm:$0xf] %v815
                  %v817 = vld [vmem:[%s801 + $0x38] sm:$0xf]
                  %818 = vst [vmem:[%s802 + $0x1c] sm:$0xf] %v817
                $region147: #{decode_one_step.1} parent=134 // loop_footer
                  %s800 = sadd.s32 1, %s796
                $region148: #{decode_one_step.1} parent=134 // loop_footer_branch
                  %795 = sbr.rel target = $region144
                $region149: #{decode_one_step.1} parent=134 // loop_exit
                  _
              $region135: #{decode_one_step.1} parent=119 // pred_fallthru
                _
            $region120: #{decode_one_step.1} parent=115 // pred_fallthru
              _
            // Predicated region
            $region121: #{decode_one_step.1} parent=115 // pred_check
              _
            $region122: #{decode_one_step.1} parent=115 // pred_check_branch
              %758 = sbr.rel (0) target = $region124
            $region123: #{decode_one_step.1} parent=115 // pred_region
              loop: start=0, step=1, limit=1
              $region125: #{decode_one_step.1} parent=123 // loop_pre_header
                _
              $region126: #{decode_one_step.1} parent=123 // loop_header
                %s761 = sphi 0, %s765
                %p762 = scmp.ge.s32.totalorder %s761, 1
                %s766 = sphi %s752, %s752
                %s767 = sphi %s750, %s750
              $region127: #{decode_one_step.1} parent=123 // loop_header_branch
                %764 = sbr.rel (%p762) target = $region131
              $region128: #{decode_one_step.1} parent=123 // loop_body
                %v768 = vld [vmem:[%s766] sm:$0xf]
                %769 = vst [vmem:[%s767] sm:$0xf] %v768
                %v770 = vld [vmem:[%s766 + $0x8] sm:$0xf]
                %771 = vst [vmem:[%s767 + $0x4] sm:$0xf] %v770
                %v772 = vld [vmem:[%s766 + $0x10] sm:$0xf]
                %773 = vst [vmem:[%s767 + $0x8] sm:$0xf] %v772
                %v774 = vld [vmem:[%s766 + $0x18] sm:$0xf]
                %775 = vst [vmem:[%s767 + $0xc] sm:$0xf] %v774
                %v776 = vld [vmem:[%s766 + $0x20] sm:$0xf]
                %777 = vst [vmem:[%s767 + $0x10] sm:$0xf] %v776
                %v778 = vld [vmem:[%s766 + $0x28] sm:$0xf]
                %779 = vst [vmem:[%s767 + $0x14] sm:$0xf] %v778
                %v780 = vld [vmem:[%s766 + $0x30] sm:$0xf]
                %781 = vst [vmem:[%s767 + $0x18] sm:$0xf] %v780
                %v782 = vld [vmem:[%s766 + $0x38] sm:$0xf]
                %783 = vst [vmem:[%s767 + $0x1c] sm:$0xf] %v782
              $region129: #{decode_one_step.1} parent=123 // loop_footer
                %s765 = sadd.s32 1, %s761
              $region130: #{decode_one_step.1} parent=123 // loop_footer_branch
                %760 = sbr.rel target = $region126
              $region131: #{decode_one_step.1} parent=123 // loop_exit
                _
            $region124: #{decode_one_step.1} parent=115 // pred_fallthru
              _
          $region116: #{decode_one_step.1} parent=111 // pred_fallthru
            _
          %819 = vnop
        $region112: #{decode_one_step.1} parent=107 // pred_fallthru
          _
        // Predicated region
        $region150: #{decode_one_step.1} parent=107 // pred_check
          %p820 = pneg %p566
        $region151: #{decode_one_step.1} parent=107 // pred_check_branch
          %822 = sbr.rel (%p820) target = $region153
        $region152: #{decode_one_step.1} parent=107 // pred_region
          %p823 = scmp.lt.s32.totalorder %s37, 1
          %s824 = scalar_select %p823, %s37, 1
          %s825 = scalar_lea.vmem %s24, %s824
        $region153: #{decode_one_step.1} parent=107 // pred_fallthru
          _
      $region108: #{decode_one_step.1} parent=5 // pred_fallthru
        _
      %p826 = scmp.le.s32.totalorder 1, %s37
      %p827 = scmp.lt.s32.totalorder %s37, 3
      %p828 = pnand %p826, %p827
      %p829 = pneg %p828
      // Predicated region
      $region154: #{decode_one_step.1} parent=5 // pred_check
        _
      $region155: #{decode_one_step.1} parent=5 // pred_check_branch
        %831 = sbr.rel (%p828) target = $region157
      $region156: #{decode_one_step.1} parent=5 // pred_region
        %s832 = ssub.s32 %s37, 1
        %s833 = sand.u32 %s533, 1
        %s834 = sand.u32 %s533, 1
        %s835 = smul.addr %s834, 32
        %s836 = scalar_lea.vmem [#allocation10], %s835
        // Predicated region
        $region158: #{decode_one_step.1} parent=156 // pred_check
          %p837 = pneg %p546
        $region159: #{decode_one_step.1} parent=156 // pred_check_branch
          %839 = sbr.rel (%p837) target = $region161
        $region160: #{decode_one_step.1} parent=156 // pred_region
          _
        $region161: #{decode_one_step.1} parent=156 // pred_fallthru
          _
        %p840 = pneg %p58
        %p841 = pneg %p55
        %p842 = pneg %p79
        %p843 = pneg %p76
        %p844 = pneg %p100
        %p845 = pneg %p97
        %p846 = pneg %p121
        %p847 = pneg %p118
        %p848 = pneg %p142
        %p849 = pneg %p139
        %p850 = pneg %p163
        %p851 = pneg %p160
        %p852 = pneg %p184
        %p853 = pneg %p181
        %p854 = pneg %p205
        %p855 = pneg %p202
        %p856 = pneg %p226
        %p857 = pneg %p223
        %p858 = pneg %p247
        %p859 = pneg %p244
        %p860 = pneg %p268
        %p861 = pneg %p265
        %p862 = pneg %p289
        %p863 = pneg %p286
        %p864 = pneg %p310
        %p865 = pneg %p307
        %p866 = pneg %p331
        %p867 = pneg %p328
        %p868 = pneg %p352
        %p869 = pneg %p349
        %p870 = pneg %p373
        %p871 = pneg %p370
        %p872 = pneg %p394
        %p873 = pneg %p391
        %p874 = pneg %p415
        %p875 = pneg %p412
        %p876 = pneg %p436
        %p877 = pneg %p433
        %p878 = pneg %p457
        %p879 = pneg %p454
        %p880 = pneg %p478
        %p881 = pneg %p475
        %p882 = pneg %p499
        %p883 = pneg %p496
        %p884 = pneg %p520
        %p885 = pneg %p517
        %s886 = sand.u32 %s533, 1
        %s887 = sand.u32 %s533, 1
        %s888 = smul.addr %s887, 32
        %s889 = scalar_lea.vmem [#allocation10], %s888
        %p890 = pneg %p546
        %p891 = pneg %p543
        %p892 = scmp.lt.s32.totalorder %s42, 1
        %s893 = scalar_select %p892, %s42, 1
        %s894 = scalar_lea.vmem %s24, %s893
        %p895 = pneg %p572
        %p896 = pneg %p569
        %p897 = pneg %p593
        %p898 = pneg %p590
        %p899 = pneg %p614
        %p900 = pneg %p611
        %p901 = pneg %p635
        %p902 = pneg %p632
        %p903 = pneg %p656
        %p904 = pneg %p653
        %p905 = scmp.lt.s32.totalorder %s42, 1
        %s906 = scalar_select %p905, %s42, 1
        %s907 = scalar_lea.vmem %s24, %s906
        %v909 = vld [vmem:[%s9] sm:$0xff]
        %p910 = scmp.eq.s32.totalorder %s42, 0
        // Predicated region
        $region162: #{decode_one_step.1} parent=156 // pred_check
          %p911 = pneg %p910
        $region163: #{decode_one_step.1} parent=156 // pred_check_branch
          %913 = sbr.rel (%p911) target = $region165
        $region164: #{decode_one_step.1} parent=156 // pred_region
          %v914 = vld [vmem:[%s0] sm:$0xff]
          %v915 = vld [vmem:[%s1] sm:$0xff]
          %v916 = vld [vmem:[%s2] sm:$0xff]
          %v917 = vld [vmem:[%s10] sm:$0xff]
          %v918 = vld [vmem:[%s11] sm:$0xff]
          %v919 = vld [vmem:[%s11 + $0x8] sm:$0xff]
          %v920 = vld [vmem:[%s11 + $0x10] sm:$0xff]
          %v921 = vld [vmem:[%s11 + $0x18] sm:$0xff]
          %vm922 = vcmask 261120
          %v924 = vsel %vm922, %v915, 0
          %926 = vmatprep.subr.mxu0 0.0
          %927 = vmatpush1.msra.mxu0 %v918
          %928 = vmatprep.subr.mxu0 0.0
          %929 = vmatpush1.msra.mxu0 %v919
          %930 = vmatprep.subr.mxu0 0.0
          %931 = vmatpush1.msra.mxu0 %v920
          %932 = vmatprep.subr.mxu0 0.0
          %933 = vmatpush1.msra.mxu0 %v921
          %934 = vmatprep.subr.mxu0 0.0
          %935 = vmatpush1.msra.mxu0 0.0
          %936 = vmatprep.subr.mxu0 0.0
          %937 = vmatpush1.msra.mxu0 0.0
          %938 = vmatprep.subr.mxu0 0.0
          %939 = vmatpush1.msra.mxu0 0.0
          %940 = vmatprep.subr.mxu0 0.0
          %941 = vmatpush1.msra.mxu0 0.0
          %942 = vmatprep.subr.mxu0 0.0
          %943 = vmatpush1.msra.mxu0 0.0
          %944 = vmatprep.subr.mxu0 0.0
          %945 = vmatpush1.msra.mxu0 0.0
          %946 = vmatprep.subr.mxu0 0.0
          %947 = vmatpush1.msra.mxu0 0.0
          %948 = vmatprep.subr.mxu0 0.0
          %949 = vmatpush1.msra.mxu0 0.0
          %950 = vmatprep.subr.mxu0 0.0
          %951 = vmatpush1.msra.mxu0 0.0
          %952 = vmatprep.subr.mxu0 0.0
          %953 = vmatpush1.msra.mxu0 0.0
          %954 = vmatprep.subr.mxu0 0.0
          %955 = vmatpush1.msra.mxu0 0.0
          %956 = vmatprep.subr.mxu0 0.0
          %957 = vmatpush1.msra.mxu0 0.0
          %958 = vmatprep.subr.mxu0 0.0
          %959 = vmatpush1.msra.mxu0 0.0
          %960 = vmatprep.subr.mxu0 0.0
          %961 = vmatpush1.msra.mxu0 0.0
          %962 = vmatprep.subr.mxu0 0.0
          %963 = vmatpush1.msra.mxu0 0.0
          %964 = vmatprep.subr.mxu0 0.0
          %965 = vmatpush1.msra.mxu0 0.0
          %966 = vmatprep.subr.mxu0 0.0
          %967 = vmatpush1.msra.mxu0 0.0
          %968 = vmatprep.subr.mxu0 0.0
          %969 = vmatpush1.msra.mxu0 0.0
          %970 = vmatprep.subr.mxu0 0.0
          %971 = vmatpush1.msra.mxu0 0.0
          %972 = vmatprep.subr.mxu0 0.0
          %973 = vmatpush1.msra.mxu0 0.0
          %974 = vmatprep.subr.mxu0 0.0
          %975 = vmatpush1.msra.mxu0 0.0
          %976 = vmatprep.subr.mxu0 0.0
          %977 = vmatpush1.msra.mxu0 0.0
          %978 = vmatprep.subr.mxu0 0.0
          %979 = vmatpush1.msra.mxu0 0.0
          %980 = vmatprep.subr.mxu0 0.0
          %981 = vmatpush1.msra.mxu0 0.0
          %982 = vmatprep.subr.mxu0 0.0
          %983 = vmatpush1.msra.mxu0 0.0
          %984 = vmatprep.subr.mxu0 0.0
          %985 = vmatpush1.msra.mxu0 0.0
          %986 = vmatprep.subr.mxu0 0.0
          %987 = vmatpush1.msra.mxu0 0.0
          %988 = vmatprep.subr.mxu0 0.0
          %989 = vmatpush1.msra.mxu0 0.0
          %990 = vmatprep.mubr.f32.mxu0 0.0
          %991 = vmatmul.mubr.f32.gmra.mrb[0].mxu0 %v924
          %v992 = vpop.f32.mrb[0].mxu0
          %v993 = vadd.f32 0.0, %v992
          %v994 = vpop.f32.mrb[0].mxu0
          %995 = vdwg.mxu0
          %vm996 = vcmask 64512
          %v998 = vsel %vm996, %v914, 0
          %1000 = vmatprep.subr.mxu0 0.0
          %1001 = vmatpush1.msra.mxu0 %v917
          %1002 = vmatprep.subr.mxu0 0.0
          %1003 = vmatpush1.msra.mxu0 0.0
          %1004 = vmatprep.subr.mxu0 0.0
          %1005 = vmatpush1.msra.mxu0 0.0
          %1006 = vmatprep.subr.mxu0 0.0
          %1007 = vmatpush1.msra.mxu0 0.0
          %1008 = vmatprep.subr.mxu0 0.0
          %1009 = vmatpush1.msra.mxu0 0.0
          %1010 = vmatprep.subr.mxu0 0.0
          %1011 = vmatpush1.msra.mxu0 0.0
          %1012 = vmatprep.subr.mxu0 0.0
          %1013 = vmatpush1.msra.mxu0 0.0
          %1014 = vmatprep.subr.mxu0 0.0
          %1015 = vmatpush1.msra.mxu0 0.0
          %1016 = vmatprep.subr.mxu0 0.0
          %1017 = vmatpush1.msra.mxu0 0.0
          %1018 = vmatprep.subr.mxu0 0.0
          %1019 = vmatpush1.msra.mxu0 0.0
          %1020 = vmatprep.subr.mxu0 0.0
          %1021 = vmatpush1.msra.mxu0 0.0
          %1022 = vmatprep.subr.mxu0 0.0
          %1023 = vmatpush1.msra.mxu0 0.0
          %1024 = vmatprep.subr.mxu0 0.0
          %1025 = vmatpush1.msra.mxu0 0.0
          %1026 = vmatprep.subr.mxu0 0.0
          %1027 = vmatpush1.msra.mxu0 0.0
          %1028 = vmatprep.subr.mxu0 0.0
          %1029 = vmatpush1.msra.mxu0 0.0
          %1030 = vmatprep.subr.mxu0 0.0
          %1031 = vmatpush1.msra.mxu0 0.0
          %1032 = vmatprep.subr.mxu0 0.0
          %1033 = vmatpush1.msra.mxu0 0.0
          %1034 = vmatprep.subr.mxu0 0.0
          %1035 = vmatpush1.msra.mxu0 0.0
          %1036 = vmatprep.subr.mxu0 0.0
          %1037 = vmatpush1.msra.mxu0 0.0
          %1038 = vmatprep.subr.mxu0 0.0
          %1039 = vmatpush1.msra.mxu0 0.0
          %1040 = vmatprep.subr.mxu0 0.0
          %1041 = vmatpush1.msra.mxu0 0.0
          %1042 = vmatprep.subr.mxu0 0.0
          %1043 = vmatpush1.msra.mxu0 0.0
          %1044 = vmatprep.subr.mxu0 0.0
          %1045 = vmatpush1.msra.mxu0 0.0
          %1046 = vmatprep.subr.mxu0 0.0
          %1047 = vmatpush1.msra.mxu0 0.0
          %1048 = vmatprep.subr.mxu0 0.0
          %1049 = vmatpush1.msra.mxu0 0.0
          %1050 = vmatprep.subr.mxu0 0.0
          %1051 = vmatpush1.msra.mxu0 0.0
          %1052 = vmatprep.subr.mxu0 0.0
          %1053 = vmatpush1.msra.mxu0 0.0
          %1054 = vmatprep.subr.mxu0 0.0
          %1055 = vmatpush1.msra.mxu0 0.0
          %1056 = vmatprep.subr.mxu0 0.0
          %1057 = vmatpush1.msra.mxu0 0.0
          %1058 = vmatprep.subr.mxu0 0.0
          %1059 = vmatpush1.msra.mxu0 0.0
          %1060 = vmatprep.subr.mxu0 0.0
          %1061 = vmatpush1.msra.mxu0 0.0
          %1062 = vmatprep.subr.mxu0 0.0
          %1063 = vmatpush1.msra.mxu0 0.0
          %1064 = vmatprep.mubr.f32.mxu0 0.0
          %1065 = vmatmul.mubr.f32.gmra.mrb[0].mxu0 %v998
          %v1066 = vpop.f32.mrb[0].mxu0
          %v1067 = vadd.f32 %v993, %v1066
          %v1068 = vpop.f32.mrb[0].mxu0
          %1069 = vdwg.mxu0
          %v1070 = vld [vmem:[%s12] sm:$0x1]
          %v1072 = vlaneseq
          %v1073 = vshrl.u32 %v1072, 7
          %v1074 = vsub.s32 0, %v1073
          %v1075 = vrot.slane %v1070, %v1074
          %v1077 = vadd.f32 %v1067, %v1075
          %v1078 = vxor.u32 %v1077, 2147483648
          %v1079 = vmul.f32 %v1078, 1.442695
          %v1080 = vpow.pop %v1079
          %v1081 = vadd.f32 %v1080, 1.0
          %v1082 = vrcp.pop %v1081
          %v1083 = vmul.f32 1.0, %v1082
          %v1084 = vtanh.pop %v1077
          %1086 = vrot.lane.b32.xlu0 %v916, 32
          %v1087 = vpop.permute.xlu0 %1086
          %v1089 = vmul.f32 %v1083, %v1087
          %1091 = vrot.lane.b32.xlu0 %v1084, 64
          %v1092 = vpop.permute.xlu0 %1091
          %v1094 = vmul.f32 %v1083, %v1092
          %1096 = vrot.lane.b32.xlu0 %v1094, 32
          %v1097 = vpop.permute.xlu0 %1096
          %v1099 = vadd.f32 %v1089, %v1097
          %v1100 = vtanh.pop %v1099
          %1102 = vrot.lane.b32.xlu0 %v1100, 64
          %v1103 = vpop.permute.xlu0 %1102
          %v1105 = vmul.f32 %v1083, %v1103
          %1107 = vrot.lane.b32.xlu0 %v1105, 32
          %v1108 = vpop.permute.xlu0 %1107
          %1110 = vst.msk [vmem:[%s25] sm:$0xff] %vm922, %v1108
          %1112 = vrot.lane.b32.xlu0 %v1099, 96
          %v1113 = vpop.permute.xlu0 %1112
          %1115 = vst.msk [vmem:[%s26] sm:$0xff] %vm922, %v1113
          %v1116 = vld [vmem:[%s3] sm:$0xff]
          %v1117 = vld [vmem:[%s3 + $0x8] sm:$0xff]
          %v1118 = vld [vmem:[%s3 + $0x10] sm:$0xff]
          %v1119 = vld [vmem:[%s3 + $0x18] sm:$0xff]
          %v1120 = vld [vmem:[%s3 + $0x20] sm:$0xff]
          %v1121 = vld [vmem:[%s3 + $0x28] sm:$0xff]
          %v1122 = vld [vmem:[%s3 + $0x30] sm:$0xff]
          %v1123 = vld [vmem:[%s3 + $0x38] sm:$0xff]
          %v1124 = vld [vmem:[%s5] sm:$0xff]
          %v1125 = vld [vmem:[%s6] sm:$0xff]
          %v1126 = vld [vmem:[%s4] sm:$0xff]
          %v1127 = vld [vmem:[%s4 + $0x8] sm:$0xff]
          %v1128 = vld [vmem:[%s4 + $0x10] sm:$0xff]
          %v1129 = vld [vmem:[%s4 + $0x18] sm:$0xff]
          %v1130 = vld [vmem:[%s4 + $0x20] sm:$0xff]
          %v1131 = vld [vmem:[%s4 + $0x28] sm:$0xff]
          %v1132 = vld [vmem:[%s4 + $0x30] sm:$0xff]
          %v1133 = vld [vmem:[%s4 + $0x38] sm:$0xff]
          %v1134 = vld [vmem:[%s13] sm:$0xff]
          %v1135 = vld [vmem:[%s13 + $0x8] sm:$0xff]
          %v1136 = vld [vmem:[%s13 + $0x10] sm:$0xff]
          %v1137 = vld [vmem:[%s13 + $0x18] sm:$0xff]
          %v1138 = vsel %vm922, %v1108, 0
          %1140 = vmatprep.subr.mxu0 0.0
          %1141 = vmatpush1.msra.mxu0 %v1134
          %1142 = vmatprep.subr.mxu0 0.0
          %1143 = vmatpush1.msra.mxu0 %v1135
          %1144 = vmatprep.subr.mxu0 0.0
          %1145 = vmatpush1.msra.mxu0 %v1136
          %1146 = vmatprep.subr.mxu0 0.0
          %1147 = vmatpush1.msra.mxu0 %v1137
          %1148 = vmatprep.subr.mxu0 0.0
          %1149 = vmatpush1.msra.mxu0 0.0
          %1150 = vmatprep.subr.mxu0 0.0
          %1151 = vmatpush1.msra.mxu0 0.0
          %1152 = vmatprep.subr.mxu0 0.0
          %1153 = vmatpush1.msra.mxu0 0.0
          %1154 = vmatprep.subr.mxu0 0.0
          %1155 = vmatpush1.msra.mxu0 0.0
          %1156 = vmatprep.subr.mxu0 0.0
          %1157 = vmatpush1.msra.mxu0 0.0
          %1158 = vmatprep.subr.mxu0 0.0
          %1159 = vmatpush1.msra.mxu0 0.0
          %1160 = vmatprep.subr.mxu0 0.0
          %1161 = vmatpush1.msra.mxu0 0.0
          %1162 = vmatprep.subr.mxu0 0.0
          %1163 = vmatpush1.msra.mxu0 0.0
          %1164 = vmatprep.subr.mxu0 0.0
          %1165 = vmatpush1.msra.mxu0 0.0
          %1166 = vmatprep.subr.mxu0 0.0
          %1167 = vmatpush1.msra.mxu0 0.0
          %1168 = vmatprep.subr.mxu0 0.0
          %1169 = vmatpush1.msra.mxu0 0.0
          %1170 = vmatprep.subr.mxu0 0.0
          %1171 = vmatpush1.msra.mxu0 0.0
          %1172 = vmatprep.subr.mxu0 0.0
          %1173 = vmatpush1.msra.mxu0 0.0
          %1174 = vmatprep.subr.mxu0 0.0
          %1175 = vmatpush1.msra.mxu0 0.0
          %1176 = vmatprep.subr.mxu0 0.0
          %1177 = vmatpush1.msra.mxu0 0.0
          %1178 = vmatprep.subr.mxu0 0.0
          %1179 = vmatpush1.msra.mxu0 0.0
          %1180 = vmatprep.subr.mxu0 0.0
          %1181 = vmatpush1.msra.mxu0 0.0
          %1182 = vmatprep.subr.mxu0 0.0
          %1183 = vmatpush1.msra.mxu0 0.0
          %1184 = vmatprep.subr.mxu0 0.0
          %1185 = vmatpush1.msra.mxu0 0.0
          %1186 = vmatprep.subr.mxu0 0.0
          %1187 = vmatpush1.msra.mxu0 0.0
          %1188 = vmatprep.subr.mxu0 0.0
          %1189 = vmatpush1.msra.mxu0 0.0
          %1190 = vmatprep.subr.mxu0 0.0
          %1191 = vmatpush1.msra.mxu0 0.0
          %1192 = vmatprep.subr.mxu0 0.0
          %1193 = vmatpush1.msra.mxu0 0.0
          %1194 = vmatprep.subr.mxu0 0.0
          %1195 = vmatpush1.msra.mxu0 0.0
          %1196 = vmatprep.subr.mxu0 0.0
          %1197 = vmatpush1.msra.mxu0 0.0
          %1198 = vmatprep.subr.mxu0 0.0
          %1199 = vmatpush1.msra.mxu0 0.0
          %1200 = vmatprep.subr.mxu0 0.0
          %1201 = vmatpush1.msra.mxu0 0.0
          %1202 = vmatprep.subr.mxu0 0.0
          %1203 = vmatpush1.msra.mxu0 0.0
          %1204 = vmatprep.mubr.f32.mxu0 0.0
          %1205 = vmatmul.mubr.f32.gmra.mrb[0].mxu0 %v1138
          %v1206 = vpop.f32.mrb[0].mxu0
          %v1207 = vadd.f32 0.0, %v1206
          %v1208 = vpop.f32.mrb[0].mxu0
          %1209 = vdwg.mxu0
          %v1211 = vcombine.high %v1207, %v1207
          %v1213 = vunpack.c.l.s4 1966171168
          %v1214 = vunpack.c.0.s8 %v1213
          %v1215 = vlaneseq
          %v1216 = vshrl.u32 %v1215, 7
          %v1217 = vsub.s32 %v1214, %v1216
          %v1218 = vrot.slane %v1207, %v1217
          %v1220 = vunpack.c.l.s4 1966171168
          %v1221 = vunpack.c.0.s8 %v1220
          %v1222 = vlaneseq
          %v1223 = vshrl.u32 %v1222, 7
          %v1224 = vsub.s32 %v1221, %v1223
          %v1225 = vrot.slane %v1211, %v1224
          %v1226 = vcombine.high %v1218, %v1218
          %v1227 = vcombine.high %v1225, %v1225
          %v1229 = vunpack.c.l.s4 1966171168
          %v1230 = vunpack.c.0.s8 %v1229
          %v1231 = vlaneseq
          %v1232 = vshrl.u32 %v1231, 7
          %v1233 = vsub.s32 %v1230, %v1232
          %v1234 = vrot.slane %v1218, %v1233
          %v1236 = vunpack.c.l.s4 1966171168
          %v1237 = vunpack.c.0.s8 %v1236
          %v1238 = vlaneseq
          %v1239 = vshrl.u32 %v1238, 7
          %v1240 = vsub.s32 %v1237, %v1239
          %v1241 = vrot.slane %v1225, %v1240
          %v1243 = vunpack.c.l.s4 1966171168
          %v1244 = vunpack.c.0.s8 %v1243
          %v1245 = vlaneseq
          %v1246 = vshrl.u32 %v1245, 7
          %v1247 = vsub.s32 %v1244, %v1246
          %v1248 = vrot.slane %v1226, %v1247
          %v1250 = vunpack.c.l.s4 1966171168
          %v1251 = vunpack.c.0.s8 %v1250
          %v1252 = vlaneseq
          %v1253 = vshrl.u32 %v1252, 7
          %v1254 = vsub.s32 %v1251, %v1253
          %v1255 = vrot.slane %v1227, %v1254
          %v1256 = vcombine.high %v1234, %v1234
          %v1257 = vcombine.high %v1241, %v1241
          %v1258 = vcombine.high %v1248, %v1248
          %v1259 = vcombine.high %v1255, %v1255
          %v1260 = vlaneseq
          %v1261 = vshrl.u32 %v1260, 7
          %v1262 = vsub.s32 0, %v1261
          %v1263 = vrot.slane %v1234, %v1262
          %v1264 = vlaneseq
          %v1265 = vshrl.u32 %v1264, 7
          %v1266 = vsub.s32 0, %v1265
          %v1267 = vrot.slane %v1248, %v1266
          %v1268 = vlaneseq
          %v1269 = vshrl.u32 %v1268, 7
          %v1270 = vsub.s32 0, %v1269
          %v1271 = vrot.slane %v1256, %v1270
          %v1272 = vlaneseq
          %v1273 = vshrl.u32 %v1272, 7
          %v1274 = vsub.s32 0, %v1273
          %v1275 = vrot.slane %v1258, %v1274
          %v1276 = vlaneseq
          %v1277 = vshrl.u32 %v1276, 7
          %v1278 = vsub.s32 0, %v1277
          %v1279 = vrot.slane %v1241, %v1278
          %v1280 = vlaneseq
          %v1281 = vshrl.u32 %v1280, 7
          %v1282 = vsub.s32 0, %v1281
          %v1283 = vrot.slane %v1255, %v1282
          %v1284 = vlaneseq
          %v1285 = vshrl.u32 %v1284, 7
          %v1286 = vsub.s32 0, %v1285
          %v1287 = vrot.slane %v1257, %v1286
          %v1288 = vlaneseq
          %v1289 = vshrl.u32 %v1288, 7
          %v1290 = vsub.s32 0, %v1289
          %v1291 = vrot.slane %v1259, %v1290
          %v1300 = vadd.f32 %v1126, %v1263
          %v1301 = vadd.f32 %v1127, %v1267
          %v1302 = vadd.f32 %v1128, %v1271
          %v1303 = vadd.f32 %v1129, %v1275
          %v1304 = vadd.f32 %v1130, %v1279
          %v1305 = vadd.f32 %v1131, %v1283
          %v1306 = vadd.f32 %v1132, %v1287
          %v1307 = vadd.f32 %v1133, %v1291
          %v1308 = vlaneseq
          %v1309 = vshrl.u32 %v1308, 7
          %v1310 = vsub.s32 0, %v1309
          %v1311 = vrot.slane %v1124, %v1310
          %1313 = vbcast.lane.b32.xlu0 %v1311, 256
          %v1314 = vpop.permute.xlu0 %1313
          %v1315 = vlaneseq
          %v1316 = vshrl.u32 %v1315, 7
          %v1317 = vsub.s32 1, %v1316
          %v1318 = vrot.slane %v1124, %v1317
          %1320 = vbcast.lane.b32.xlu0 %v1318, 256
          %v1321 = vpop.permute.xlu0 %1320
          %v1322 = vlaneseq
          %v1323 = vshrl.u32 %v1322, 7
          %v1324 = vsub.s32 2, %v1323
          %v1325 = vrot.slane %v1124, %v1324
          %1327 = vbcast.lane.b32.xlu0 %v1325, 256
          %v1328 = vpop.permute.xlu0 %1327
          %v1329 = vlaneseq
          %v1330 = vshrl.u32 %v1329, 7
          %v1331 = vsub.s32 3, %v1330
          %v1332 = vrot.slane %v1124, %v1331
          %1334 = vbcast.lane.b32.xlu0 %v1332, 256
          %v1335 = vpop.permute.xlu0 %1334
          %v1336 = vlaneseq
          %v1337 = vshrl.u32 %v1336, 7
          %v1338 = vsub.s32 4, %v1337
          %v1339 = vrot.slane %v1124, %v1338
          %1341 = vbcast.lane.b32.xlu0 %v1339, 256
          %v1342 = vpop.permute.xlu0 %1341
          %v1343 = vlaneseq
          %v1344 = vshrl.u32 %v1343, 7
          %v1345 = vsub.s32 5, %v1344
          %v1346 = vrot.slane %v1124, %v1345
          %1348 = vbcast.lane.b32.xlu0 %v1346, 256
          %v1349 = vpop.permute.xlu0 %1348
          %v1350 = vlaneseq
          %v1351 = vshrl.u32 %v1350, 7
          %v1352 = vsub.s32 6, %v1351
          %v1353 = vrot.slane %v1124, %v1352
          %1355 = vbcast.lane.b32.xlu0 %v1353, 256
          %v1356 = vpop.permute.xlu0 %1355
          %v1357 = vlaneseq
          %v1358 = vshrl.u32 %v1357, 7
          %v1359 = vsub.s32 7, %v1358
          %v1360 = vrot.slane %v1124, %v1359
          %1362 = vbcast.lane.b32.xlu0 %v1360, 256
          %v1363 = vpop.permute.xlu0 %1362
          %v1364 = vld [vmem:[%s14] sm:$0x1]
          %v1366 = vlaneseq
          %v1367 = vshrl.u32 %v1366, 7
          %v1368 = vsub.s32 0, %v1367
          %v1369 = vrot.slane %v1364, %v1368
          %v1371 = vmul.f32 %v1314, %v1369
          %v1372 = vmul.f32 %v1321, %v1369
          %v1373 = vmul.f32 %v1328, %v1369
          %v1374 = vmul.f32 %v1335, %v1369
          %v1375 = vmul.f32 %v1342, %v1369
          %v1376 = vmul.f32 %v1349, %v1369
          %v1377 = vmul.f32 %v1356, %v1369
          %v1378 = vmul.f32 %v1363, %v1369
          %v1379 = vadd.f32 %v1300, %v1371
          %v1380 = vadd.f32 %v1301, %v1372
          %v1381 = vadd.f32 %v1302, %v1373
          %v1382 = vadd.f32 %v1303, %v1374
          %v1383 = vadd.f32 %v1304, %v1375
          %v1384 = vadd.f32 %v1305, %v1376
          %v1385 = vadd.f32 %v1306, %v1377
          %v1386 = vadd.f32 %v1307, %v1378
          %v1387 = vtanh.pop %v1379
          %v1388 = vtanh.pop %v1380
          %v1389 = vtanh.pop %v1381
          %v1390 = vtanh.pop %v1382
          %v1391 = vtanh.pop %v1383
          %v1392 = vtanh.pop %v1384
          %v1393 = vtanh.pop %v1385
          %v1394 = vtanh.pop %v1386
          %v1395 = vld [vmem:[%s15] sm:$0x1]
          %v1397 = vlaneseq
          %v1398 = vshrl.u32 %v1397, 7
          %v1399 = vsub.s32 0, %v1398
          %v1400 = vrot.slane %v1395, %v1399
          %v1402 = vmul.f32 %v1387, %v1400
          %v1403 = vmul.f32 %v1388, %v1400
          %v1404 = vmul.f32 %v1389, %v1400
          %v1405 = vmul.f32 %v1390, %v1400
          %v1406 = vmul.f32 %v1391, %v1400
          %v1407 = vmul.f32 %v1392, %v1400
          %v1408 = vmul.f32 %v1393, %v1400
          %v1409 = vmul.f32 %v1394, %v1400
          %v1410 = vsel %vm922, %v1402, 0.0
          %1411 = vadd.xlane.f32.xlu0 %v1410
          %v1412 = vpop.xlane.xlu0 %1411
          %v1413 = vsel %vm922, %v1403, 0.0
          %1414 = vadd.xlane.f32.xlu0 %v1413
          %v1415 = vpop.xlane.xlu0 %1414
          %v1416 = vsel %vm922, %v1404, 0.0
          %1417 = vadd.xlane.f32.xlu0 %v1416
          %v1418 = vpop.xlane.xlu0 %1417
          %v1419 = vsel %vm922, %v1405, 0.0
          %1420 = vadd.xlane.f32.xlu0 %v1419
          %v1421 = vpop.xlane.xlu0 %1420
          %v1422 = vsel %vm922, %v1406, 0.0
          %1423 = vadd.xlane.f32.xlu0 %v1422
          %v1424 = vpop.xlane.xlu0 %1423
          %v1425 = vsel %vm922, %v1407, 0.0
          %1426 = vadd.xlane.f32.xlu0 %v1425
          %v1427 = vpop.xlane.xlu0 %1426
          %v1428 = vsel %vm922, %v1408, 0.0
          %1429 = vadd.xlane.f32.xlu0 %v1428
          %v1430 = vpop.xlane.xlu0 %1429
          %v1431 = vsel %vm922, %v1409, 0.0
          %1432 = vadd.xlane.f32.xlu0 %v1431
          %v1433 = vpop.xlane.xlu0 %1432
          %vm1434 = vcmp.gt.f32.partialorder %v1125, 0.0
          %v1435 = vsel %vm1434, 1, 0
          %v1436 = vcvt.s32.f32 %v1435
          %v1445 = vlaneseq
          %v1446 = vand.u32 %v1445, 127
          %v1447 = vlaneseq
          %v1448 = vshrl.u32 %v1447, 7
          %v1449 = vsub.s32 %v1446, %v1448
          %v1450 = vrot.slane %v1412, %v1449
          %v1451 = vlaneseq
          %v1452 = vshrl.u32 %v1451, 7
          %v1453 = vsub.s32 %v1446, %v1452
          %v1454 = vrot.slane %v1415, %v1453
          %v1455 = vlaneseq
          %v1456 = vshrl.u32 %v1455, 7
          %v1457 = vsub.s32 %v1446, %v1456
          %v1458 = vrot.slane %v1418, %v1457
          %v1459 = vlaneseq
          %v1460 = vshrl.u32 %v1459, 7
          %v1461 = vsub.s32 %v1446, %v1460
          %v1462 = vrot.slane %v1421, %v1461
          %v1463 = vlaneseq
          %v1464 = vshrl.u32 %v1463, 7
          %v1465 = vsub.s32 %v1446, %v1464
          %v1466 = vrot.slane %v1424, %v1465
          %v1467 = vlaneseq
          %v1468 = vshrl.u32 %v1467, 7
          %v1469 = vsub.s32 %v1446, %v1468
          %v1470 = vrot.slane %v1427, %v1469
          %v1471 = vlaneseq
          %v1472 = vshrl.u32 %v1471, 7
          %v1473 = vsub.s32 %v1446, %v1472
          %v1474 = vrot.slane %v1430, %v1473
          %v1475 = vlaneseq
          %v1476 = vshrl.u32 %v1475, 7
          %v1477 = vsub.s32 %v1446, %v1476
          %v1478 = vrot.slane %v1433, %v1477
          %vm1479 = vcmask 1041409
          %v1480 = vsel %vm1479, %v1454, %v1450
          %vm1481 = vcmask 1042434
          %v1482 = vsel %vm1481, %v1458, %v1480
          %vm1483 = vcmask 1043459
          %v1484 = vsel %vm1483, %v1462, %v1482
          %vm1485 = vcmask 1044484
          %v1486 = vsel %vm1485, %v1466, %v1484
          %vm1487 = vcmask 1045509
          %v1488 = vsel %vm1487, %v1470, %v1486
          %vm1489 = vcmask 1046534
          %v1490 = vsel %vm1489, %v1474, %v1488
          %vm1491 = vcmask 1047559
          %v1492 = vsel %vm1491, %v1478, %v1490
          %v1494 = vsel %vm1434, %v1492, -1e+30
          %v1495 = vsel %vm996, %v1494, -inf
          %1496 = vmax.xlane.f32.xlu0 %v1495
          %v1497 = vpop.xlane.xlu0 %1496
          %v1498 = vsub.f32 %v1494, %v1497
          %v1499 = vmul.f32 %v1498, 1.442695
          %v1500 = vpow.pop %v1499
          %v1501 = vmul.f32 %v1500, %v1436
          %v1502 = vsel %vm996, %v1501, 0.0
          %1503 = vadd.xlane.f32.xlu0 %v1502
          %v1504 = vpop.xlane.xlu0 %1503
          %v1505 = vmax.f32 %v1504, 1e-30
          %v1506 = vrcp.pop %v1505
          %v1507 = vmul.f32 %v1501, %v1506
          %v1508 = vmin.f32 %v1507, %v1124
          %v1509 = vsel %vm996, %v1508, 0.0
          %1510 = vadd.xlane.f32.xlu0 %v1509
          %v1511 = vpop.xlane.xlu0 %1510
          %vm1512 = vcmask 7168
          %1513 = vst.msk [vmem:[#allocation5] sm:$0xff] %vm1512, %v1511
          %v1514 = vadd.f32 %v1124, %v1507
          %1515 = vst.msk [vmem:[%s27] sm:$0xff] %vm996, %v1514
          %v1516 = vlaneseq
          %v1517 = vshrl.u32 %v1516, 7
          %v1518 = vsub.s32 0, %v1517
          %v1519 = vrot.slane %v1507, %v1518
          %1521 = vbcast.lane.b32.xlu0 %v1519, 256
          %v1522 = vpop.permute.xlu0 %1521
          %v1523 = vlaneseq
          %v1524 = vshrl.u32 %v1523, 7
          %v1525 = vsub.s32 1, %v1524
          %v1526 = vrot.slane %v1507, %v1525
          %1528 = vbcast.lane.b32.xlu0 %v1526, 256
          %v1529 = vpop.permute.xlu0 %1528
          %v1530 = vlaneseq
          %v1531 = vshrl.u32 %v1530, 7
          %v1532 = vsub.s32 2, %v1531
          %v1533 = vrot.slane %v1507, %v1532
          %1535 = vbcast.lane.b32.xlu0 %v1533, 256
          %v1536 = vpop.permute.xlu0 %1535
          %v1537 = vlaneseq
          %v1538 = vshrl.u32 %v1537, 7
          %v1539 = vsub.s32 3, %v1538
          %v1540 = vrot.slane %v1507, %v1539
          %1542 = vbcast.lane.b32.xlu0 %v1540, 256
          %v1543 = vpop.permute.xlu0 %1542
          %v1544 = vlaneseq
          %v1545 = vshrl.u32 %v1544, 7
          %v1546 = vsub.s32 4, %v1545
          %v1547 = vrot.slane %v1507, %v1546
          %1549 = vbcast.lane.b32.xlu0 %v1547, 256
          %v1550 = vpop.permute.xlu0 %1549
          %v1551 = vlaneseq
          %v1552 = vshrl.u32 %v1551, 7
          %v1553 = vsub.s32 5, %v1552
          %v1554 = vrot.slane %v1507, %v1553
          %1556 = vbcast.lane.b32.xlu0 %v1554, 256
          %v1557 = vpop.permute.xlu0 %1556
          %v1558 = vlaneseq
          %v1559 = vshrl.u32 %v1558, 7
          %v1560 = vsub.s32 6, %v1559
          %v1561 = vrot.slane %v1507, %v1560
          %1563 = vbcast.lane.b32.xlu0 %v1561, 256
          %v1564 = vpop.permute.xlu0 %1563
          %v1565 = vlaneseq
          %v1566 = vshrl.u32 %v1565, 7
          %v1567 = vsub.s32 7, %v1566
          %v1568 = vrot.slane %v1507, %v1567
          %1570 = vbcast.lane.b32.xlu0 %v1568, 256
          %v1571 = vpop.permute.xlu0 %1570
          %v1572 = vmul.f32 %v1522, %v1116
          %v1573 = vmul.f32 %v1529, %v1117
          %v1574 = vmul.f32 %v1536, %v1118
          %v1575 = vmul.f32 %v1543, %v1119
          %v1576 = vmul.f32 %v1550, %v1120
          %v1577 = vmul.f32 %v1557, %v1121
          %v1578 = vmul.f32 %v1564, %v1122
          %v1579 = vmul.f32 %v1571, %v1123
          %vm1580 = vcmask 523264
          %v1581 = vsel %vm1580, %v1572, 0.0
          %v1582 = vrot.slane %v1581, 4
          %v1583 = vadd.f32 %v1581, %v1582
          %v1584 = vrot.slane %v1583, 2
          %v1585 = vadd.f32 %v1583, %v1584
          %v1586 = vrot.slane %v1585, 1
          %v1587 = vadd.f32 %v1585, %v1586
          %v1588 = vsel %vm1580, %v1573, 0.0
          %v1589 = vrot.slane %v1588, 4
          %v1590 = vadd.f32 %v1588, %v1589
          %v1591 = vrot.slane %v1590, 2
          %v1592 = vadd.f32 %v1590, %v1591
          %v1593 = vrot.slane %v1592, 1
          %v1594 = vadd.f32 %v1592, %v1593
          %v1595 = vsel %vm1580, %v1574, 0.0
          %v1596 = vrot.slane %v1595, 4
          %v1597 = vadd.f32 %v1595, %v1596
          %v1598 = vrot.slane %v1597, 2
          %v1599 = vadd.f32 %v1597, %v1598
          %v1600 = vrot.slane %v1599, 1
          %v1601 = vadd.f32 %v1599, %v1600
          %v1602 = vsel %vm1580, %v1575, 0.0
          %v1603 = vrot.slane %v1602, 4
          %v1604 = vadd.f32 %v1602, %v1603
          %v1605 = vrot.slane %v1604, 2
          %v1606 = vadd.f32 %v1604, %v1605
          %v1607 = vrot.slane %v1606, 1
          %v1608 = vadd.f32 %v1606, %v1607
          %v1609 = vsel %vm1580, %v1576, 0.0
          %v1610 = vrot.slane %v1609, 4
          %v1611 = vadd.f32 %v1609, %v1610
          %v1612 = vrot.slane %v1611, 2
          %v1613 = vadd.f32 %v1611, %v1612
          %v1614 = vrot.slane %v1613, 1
          %v1615 = vadd.f32 %v1613, %v1614
          %v1616 = vsel %vm1580, %v1577, 0.0
          %v1617 = vrot.slane %v1616, 4
          %v1618 = vadd.f32 %v1616, %v1617
          %v1619 = vrot.slane %v1618, 2
          %v1620 = vadd.f32 %v1618, %v1619
          %v1621 = vrot.slane %v1620, 1
          %v1622 = vadd.f32 %v1620, %v1621
          %v1623 = vsel %vm1580, %v1578, 0.0
          %v1624 = vrot.slane %v1623, 4
          %v1625 = vadd.f32 %v1623, %v1624
          %v1626 = vrot.slane %v1625, 2
          %v1627 = vadd.f32 %v1625, %v1626
          %v1628 = vrot.slane %v1627, 1
          %v1629 = vadd.f32 %v1627, %v1628
          %v1630 = vsel %vm1580, %v1579, 0.0
          %v1631 = vrot.slane %v1630, 4
          %v1632 = vadd.f32 %v1630, %v1631
          %v1633 = vrot.slane %v1632, 2
          %v1634 = vadd.f32 %v1632, %v1633
          %v1635 = vrot.slane %v1634, 1
          %v1636 = vadd.f32 %v1634, %v1635
          %v1637 = vld [vmem:[%s16] sm:$0x1]
          %v1639 = vlaneseq
          %v1640 = vshrl.u32 %v1639, 7
          %v1641 = vsub.s32 0, %v1640
          %v1642 = vrot.slane %v1637, %v1641
          %v1644 = vmul.f32 %v1587, %v1642
          %v1645 = vmul.f32 %v1594, %v1642
          %v1646 = vmul.f32 %v1601, %v1642
          %v1647 = vmul.f32 %v1608, %v1642
          %v1648 = vmul.f32 %v1615, %v1642
          %v1649 = vmul.f32 %v1622, %v1642
          %v1650 = vmul.f32 %v1629, %v1642
          %v1651 = vmul.f32 %v1636, %v1642
          %v1660 = vrot.slane %v1645, 7
          %v1661 = vsel %vm1479, %v1660, %v1644
          %v1662 = vrot.slane %v1646, 6
          %v1663 = vsel %vm1481, %v1662, %v1661
          %v1664 = vrot.slane %v1647, 5
          %v1665 = vsel %vm1483, %v1664, %v1663
          %v1666 = vrot.slane %v1648, 4
          %v1667 = vsel %vm1485, %v1666, %v1665
          %v1668 = vrot.slane %v1649, 3
          %v1669 = vsel %vm1487, %v1668, %v1667
          %v1670 = vrot.slane %v1650, 2
          %v1671 = vsel %vm1489, %v1670, %v1669
          %v1672 = vrot.slane %v1651, 1
          %v1673 = vsel %vm1491, %v1672, %v1671
          %v1675 = vsel %vm1580, %v1673, 0.0
          %1676 = vadd.xlane.f32.xlu0 %v1675
          %v1677 = vpop.xlane.xlu0 %1676
          %v1678 = vld [vmem:[%s17] sm:$0x1]
          %v1680 = vlaneseq
          %v1681 = vshrl.u32 %v1680, 7
          %v1682 = vsub.s32 0, %v1681
          %v1683 = vrot.slane %v1678, %v1682
          %1684 = vrot.lane.b32.xlu0 %v1683, 96
          %v1685 = vpop.permute.xlu0 %1684
          %v1687 = vmul.f32 %v1105, %v1685
          %1689 = vrot.lane.b32.xlu0 %v1687, 32
          %v1690 = vpop.permute.xlu0 %1689
          %v1692 = vsel %vm922, %v1690, 0.0
          %1693 = vadd.xlane.f32.xlu0 %v1692
          %v1694 = vpop.xlane.xlu0 %1693
          %v1695 = vadd.f32 %v1677, %v1694
          %v1696 = vld [vmem:[%s18] sm:$0x1]
          %v1698 = vlaneseq
          %v1699 = vshrl.u32 %v1698, 7
          %v1700 = vsub.s32 0, %v1699
          %v1701 = vrot.slane %v1696, %v1700
          %v1703 = vmul.f32 %v914, %v1701
          %v1704 = vsel %vm996, %v1703, 0.0
          %1705 = vadd.xlane.f32.xlu0 %v1704
          %v1706 = vpop.xlane.xlu0 %1705
          %v1707 = vadd.f32 %v1695, %v1706
          %v1708 = vld [vmem:[#allocation9] sm:$0x1]
          %v1710 = vlaneseq
          %v1711 = vshrl.u32 %v1710, 7
          %v1712 = vsub.s32 0, %v1711
          %v1713 = vrot.slane %v1708, %v1712
          %v1715 = vadd.f32 %v1707, %v1713
          %v1716 = vxor.u32 %v1715, 2147483648
          %v1717 = vmul.f32 %v1716, 1.442695
          %v1718 = vpow.pop %v1717
          %v1719 = vadd.f32 %v1718, 1.0
          %v1720 = vrcp.pop %v1719
          %v1721 = vmul.f32 1.0, %v1720
          %1722 = vst.msk [vmem:[#allocation3] sm:$0xff] %vm1512, %v1721
          %v1723 = vld [vmem:[%s7] sm:$0xff]
          %1724 = vset.pattern.permute.xlu0 0
          %1725 = vperm.xlu0 %1724, %v909
          %v1726 = vpop.permute.xlu0 %1725
          %vm1727 = vcmp.eq.s32.totalorder %v1723, %v1726
          %v1728 = vsel %vm1727, 1, 0
          %v1729 = vcvt.s32.f32 %v1728
          %v1730 = vsub.f32 1.0, %v1721
          %v1731 = vmul.f32 %v1507, %v1729
          %v1732 = vsel %vm996, %v1731, 0.0
          %1733 = vadd.xlane.f32.xlu0 %v1732
          %v1734 = vpop.xlane.xlu0 %1733
          %v1735 = vmul.f32 %v1730, %v1734
          %v1736 = vld [vmem:[%s8] sm:$0xff]
          %v1737 = vsub.s32 %v909, 200
          %1738 = vset.pattern.permute.xlu0 0
          %1739 = vperm.xlu0 %1738, %v1737
          %v1740 = vpop.permute.xlu0 %1739
          %vm1741 = vcmp.eq.s32.totalorder %v1740, %v1446
          %v1742 = vsel %vm1741, 1, 0
          %v1743 = vcvt.s32.f32 %v1742
          %v1744 = vmul.f32 %v1736, %v1743
          %v1745 = vsel %vm996, %v1744, 0.0
          %1746 = vadd.xlane.f32.xlu0 %v1745
          %v1747 = vpop.xlane.xlu0 %1746
          %v1748 = vadd.f32 %v1735, %v1747
          %1749 = vst.msk [vmem:[#allocation4] sm:$0xff] %vm1512, %v1748
          %v1750 = vld [vmem:[%s20] sm:$0xff]
          %v1751 = vld [vmem:[%s20 + $0x8] sm:$0xff]
          %v1752 = vld [vmem:[%s20 + $0x10] sm:$0xff]
          %v1753 = vld [vmem:[%s20 + $0x18] sm:$0xff]
          %v1754 = vld [vmem:[%s20 + $0x20] sm:$0xff]
          %v1755 = vld [vmem:[%s20 + $0x28] sm:$0xff]
          %v1756 = vld [vmem:[%s20 + $0x30] sm:$0xff]
          %v1757 = vld [vmem:[%s20 + $0x38] sm:$0xff]
          %v1758 = vld [vmem:[%s21] sm:$0xff]
          %v1759 = vld [vmem:[%s21 + $0x8] sm:$0xff]
          %v1760 = vld [vmem:[%s21 + $0x10] sm:$0xff]
          %v1761 = vld [vmem:[%s21 + $0x18] sm:$0xff]
          %1762 = vmatprep.subr.mxu0 0.0
          %1763 = vmatpush1.msra.mxu0 %v1758
          %1764 = vmatprep.subr.mxu0 0.0
          %1765 = vmatpush1.msra.mxu0 %v1759
          %1766 = vmatprep.subr.mxu0 0.0
          %1767 = vmatpush1.msra.mxu0 %v1760
          %1768 = vmatprep.subr.mxu0 0.0
          %1769 = vmatpush1.msra.mxu0 %v1761
          %1770 = vmatprep.subr.mxu0 0.0
          %1771 = vmatpush1.msra.mxu0 0.0
          %1772 = vmatprep.subr.mxu0 0.0
          %1773 = vmatpush1.msra.mxu0 0.0
          %1774 = vmatprep.subr.mxu0 0.0
          %1775 = vmatpush1.msra.mxu0 0.0
          %1776 = vmatprep.subr.mxu0 0.0
          %1777 = vmatpush1.msra.mxu0 0.0
          %1778 = vmatprep.subr.mxu0 0.0
          %1779 = vmatpush1.msra.mxu0 0.0
          %1780 = vmatprep.subr.mxu0 0.0
          %1781 = vmatpush1.msra.mxu0 0.0
          %1782 = vmatprep.subr.mxu0 0.0
          %1783 = vmatpush1.msra.mxu0 0.0
          %1784 = vmatprep.subr.mxu0 0.0
          %1785 = vmatpush1.msra.mxu0 0.0
          %1786 = vmatprep.subr.mxu0 0.0
          %1787 = vmatpush1.msra.mxu0 0.0
          %1788 = vmatprep.subr.mxu0 0.0
          %1789 = vmatpush1.msra.mxu0 0.0
          %1790 = vmatprep.subr.mxu0 0.0
          %1791 = vmatpush1.msra.mxu0 0.0
          %1792 = vmatprep.subr.mxu0 0.0
          %1793 = vmatpush1.msra.mxu0 0.0
          %1794 = vmatprep.subr.mxu0 0.0
          %1795 = vmatpush1.msra.mxu0 0.0
          %1796 = vmatprep.subr.mxu0 0.0
          %1797 = vmatpush1.msra.mxu0 0.0
          %1798 = vmatprep.subr.mxu0 0.0
          %1799 = vmatpush1.msra.mxu0 0.0
          %1800 = vmatprep.subr.mxu0 0.0
          %1801 = vmatpush1.msra.mxu0 0.0
          %1802 = vmatprep.subr.mxu0 0.0
          %1803 = vmatpush1.msra.mxu0 0.0
          %1804 = vmatprep.subr.mxu0 0.0
          %1805 = vmatpush1.msra.mxu0 0.0
          %1806 = vmatprep.subr.mxu0 0.0
          %1807 = vmatpush1.msra.mxu0 0.0
          %1808 = vmatprep.subr.mxu0 0.0
          %1809 = vmatpush1.msra.mxu0 0.0
          %1810 = vmatprep.subr.mxu0 0.0
          %1811 = vmatpush1.msra.mxu0 0.0
          %1812 = vmatprep.subr.mxu0 0.0
          %1813 = vmatpush1.msra.mxu0 0.0
          %1814 = vmatprep.subr.mxu0 0.0
          %1815 = vmatpush1.msra.mxu0 0.0
          %1816 = vmatprep.subr.mxu0 0.0
          %1817 = vmatpush1.msra.mxu0 0.0
          %1818 = vmatprep.subr.mxu0 0.0
          %1819 = vmatpush1.msra.mxu0 0.0
          %1820 = vmatprep.subr.mxu0 0.0
          %1821 = vmatpush1.msra.mxu0 0.0
          %1822 = vmatprep.subr.mxu0 0.0
          %1823 = vmatpush1.msra.mxu0 0.0
          %1824 = vmatprep.subr.mxu0 0.0
          %1825 = vmatpush1.msra.mxu0 0.0
          %1826 = vmatprep.mubr.f32.mxu0 0.0
          %1827 = vmatmul.mubr.f32.gmra.mrb[0].mxu0 %v1138
          %v1828 = vpop.f32.mrb[0].mxu0
          %v1829 = vadd.f32 0.0, %v1828
          %v1830 = vpop.f32.mrb[0].mxu0
          %1831 = vdwg.mxu0
          %v1840 = vsel %vm1479, %v1594, %v1587
          %v1841 = vsel %vm1481, %v1601, %v1840
          %v1842 = vsel %vm1483, %v1608, %v1841
          %v1843 = vsel %vm1485, %v1615, %v1842
          %v1844 = vsel %vm1487, %v1622, %v1843
          %v1845 = vsel %vm1489, %v1629, %v1844
          %v1846 = vsel %vm1491, %v1636, %v1845
          %v1847 = vsel %vm1580, %v1846, 0
          %1849 = vmatprep.subr.mxu0 0.0
          %1850 = vmatpush1.msra.mxu0 %v1750
          %1851 = vmatprep.subr.mxu0 0.0
          %1852 = vmatpush1.msra.mxu0 %v1751
          %1853 = vmatprep.subr.mxu0 0.0
          %1854 = vmatpush1.msra.mxu0 %v1752
          %1855 = vmatprep.subr.mxu0 0.0
          %1856 = vmatpush1.msra.mxu0 %v1753
          %1857 = vmatprep.subr.mxu0 0.0
          %1858 = vmatpush1.msra.mxu0 %v1754
          %1859 = vmatprep.subr.mxu0 0.0
          %1860 = vmatpush1.msra.mxu0 %v1755
          %1861 = vmatprep.subr.mxu0 0.0
          %1862 = vmatpush1.msra.mxu0 %v1756
          %1863 = vmatprep.subr.mxu0 0.0
          %1864 = vmatpush1.msra.mxu0 %v1757
          %1865 = vmatprep.subr.mxu0 0.0
          %1866 = vmatpush1.msra.mxu0 0.0
          %1867 = vmatprep.subr.mxu0 0.0
          %1868 = vmatpush1.msra.mxu0 0.0
          %1869 = vmatprep.subr.mxu0 0.0
          %1870 = vmatpush1.msra.mxu0 0.0
          %1871 = vmatprep.subr.mxu0 0.0
          %1872 = vmatpush1.msra.mxu0 0.0
          %1873 = vmatprep.subr.mxu0 0.0
          %1874 = vmatpush1.msra.mxu0 0.0
          %1875 = vmatprep.subr.mxu0 0.0
          %1876 = vmatpush1.msra.mxu0 0.0
          %1877 = vmatprep.subr.mxu0 0.0
          %1878 = vmatpush1.msra.mxu0 0.0
          %1879 = vmatprep.subr.mxu0 0.0
          %1880 = vmatpush1.msra.mxu0 0.0
          %1881 = vmatprep.subr.mxu0 0.0
          %1882 = vmatpush1.msra.mxu0 0.0
          %1883 = vmatprep.subr.mxu0 0.0
          %1884 = vmatpush1.msra.mxu0 0.0
          %1885 = vmatprep.subr.mxu0 0.0
          %1886 = vmatpush1.msra.mxu0 0.0
          %1887 = vmatprep.subr.mxu0 0.0
          %1888 = vmatpush1.msra.mxu0 0.0
          %1889 = vmatprep.subr.mxu0 0.0
          %1890 = vmatpush1.msra.mxu0 0.0
          %1891 = vmatprep.subr.mxu0 0.0
          %1892 = vmatpush1.msra.mxu0 0.0
          %1893 = vmatprep.subr.mxu0 0.0
          %1894 = vmatpush1.msra.mxu0 0.0
          %1895 = vmatprep.subr.mxu0 0.0
          %1896 = vmatpush1.msra.mxu0 0.0
          %1897 = vmatprep.subr.mxu0 0.0
          %1898 = vmatpush1.msra.mxu0 0.0
          %1899 = vmatprep.subr.mxu0 0.0
          %1900 = vmatpush1.msra.mxu0 0.0
          %1901 = vmatprep.subr.mxu0 0.0
          %1902 = vmatpush1.msra.mxu0 0.0
          %1903 = vmatprep.subr.mxu0 0.0
          %1904 = vmatpush1.msra.mxu0 0.0
          %1905 = vmatprep.subr.mxu0 0.0
          %1906 = vmatpush1.msra.mxu0 0.0
          %1907 = vmatprep.subr.mxu0 0.0
          %1908 = vmatpush1.msra.mxu0 0.0
          %1909 = vmatprep.subr.mxu0 0.0
          %1910 = vmatpush1.msra.mxu0 0.0
          %1911 = vmatprep.subr.mxu0 0.0
          %1912 = vmatpush1.msra.mxu0 0.0
          %1913 = vmatprep.mubr.f32.mxu0 0.0
          %1914 = vmatmul.mubr.f32.gmra.mrb[0].mxu0 %v1847
          %v1915 = vpop.f32.mrb[0].mxu0
          %v1916 = vadd.f32 %v1829, %v1915
          %v1917 = vpop.f32.mrb[0].mxu0
          %1918 = vdwg.mxu0
          %v1919 = vld [vmem:[%s22] sm:$0x1]
          %v1921 = vlaneseq
          %v1922 = vshrl.u32 %v1921, 7
          %v1923 = vsub.s32 0, %v1922
          %v1924 = vrot.slane %v1919, %v1923
          %v1926 = vadd.f32 %v1916, %v1924
          %1927 = vst.msk [vmem:[#allocation2] sm:$0xff] %vm1580, %v1926
          %1928 = vst.msk [vmem:[#allocation6] sm:$0xff] %vm1512, -1e+30
          %1929 = vst.msk [vmem:[#allocation7] sm:$0xff] %vm1512, 0.0
          %1930 = vst.msk [vmem:[#allocation8] sm:$0xff] %vm1512, 0.0
        $region165: #{decode_one_step.1} parent=156 // pred_fallthru
          _
        %v1931 = vld [vmem:[#allocation2] sm:$0xff]
        %v1932 = vpack.c.bf16 %v1931, %v1931
        %v1933 = vld [vmem:[%s836] sm:$0xf]
        %v1934 = vld [vmem:[%s836 + $0x4] sm:$0xf]
        %v1935 = vld [vmem:[%s836 + $0x8] sm:$0xf]
        %v1936 = vld [vmem:[%s836 + $0xc] sm:$0xf]
        %v1937 = vld [vmem:[%s836 + $0x10] sm:$0xf]
        %v1938 = vld [vmem:[%s836 + $0x14] sm:$0xf]
        %v1939 = vld [vmem:[%s836 + $0x18] sm:$0xf]
        %v1940 = vld [vmem:[%s836 + $0x1c] sm:$0xf]
        %v1941 = vld [vmem:[%s907] sm:$0x1]
        %v1943 = vlaneseq
        %v1944 = vshrl.u32 %v1943, 7
        %v1945 = vsub.s32 0, %v1944
        %v1946 = vrot.slane %v1941, %v1945
        %v1956 = vunpack.c.l.b16 %v1933
        %v1957 = vunpack.c.l.b16 %v1934
        %v1958 = vunpack.c.l.b16 %v1935
        %v1959 = vunpack.c.l.b16 %v1936
        %v1960 = vunpack.c.l.b16 %v1937
        %v1961 = vunpack.c.l.b16 %v1938
        %v1962 = vunpack.c.l.b16 %v1939
        %v1963 = vunpack.c.l.b16 %v1940
        %v1964 = vpack.c.b16 %v1957, %v1956
        %v1965 = vpack.c.b16 %v1959, %v1958
        %v1966 = vpack.c.b16 %v1961, %v1960
        %v1967 = vpack.c.b16 %v1963, %v1962
        %vm1972 = vcmask 523264
        %v1974 = vsel %vm1972, %v1932, 0
        %1976 = vmatprep.subr.bf16.mxu0 0
        %1977 = vmatpush1.bf16.msra.mxu0 %v1964
        %1978 = vmatprep.subr.bf16.mxu0 0
        %1979 = vmatpush1.bf16.msra.mxu0 %v1965
        %1980 = vmatprep.subr.bf16.mxu0 0
        %1981 = vmatpush1.bf16.msra.mxu0 %v1966
        %1982 = vmatprep.subr.bf16.mxu0 0
        %1983 = vmatpush1.bf16.msra.mxu0 %v1967
        %1984 = vmatprep.subr.bf16.mxu0 0
        %1985 = vmatpush1.bf16.msra.mxu0 0
        %1986 = vmatprep.subr.bf16.mxu0 0
        %1987 = vmatpush1.bf16.msra.mxu0 0
        %1988 = vmatprep.subr.bf16.mxu0 0
        %1989 = vmatpush1.bf16.msra.mxu0 0
        %1990 = vmatprep.subr.bf16.mxu0 0
        %1991 = vmatpush1.bf16.msra.mxu0 0
        %1992 = vmatprep.subr.bf16.mxu0 0
        %1993 = vmatpush1.bf16.msra.mxu0 0
        %1994 = vmatprep.subr.bf16.mxu0 0
        %1995 = vmatpush1.bf16.msra.mxu0 0
        %1996 = vmatprep.subr.bf16.mxu0 0
        %1997 = vmatpush1.bf16.msra.mxu0 0
        %1998 = vmatprep.subr.bf16.mxu0 0
        %1999 = vmatpush1.bf16.msra.mxu0 0
        %2000 = vmatprep.subr.bf16.mxu0 0
        %2001 = vmatpush1.bf16.msra.mxu0 0
        %2002 = vmatprep.subr.bf16.mxu0 0
        %2003 = vmatpush1.bf16.msra.mxu0 0
        %2004 = vmatprep.subr.bf16.mxu0 0
        %2005 = vmatpush1.bf16.msra.mxu0 0
        %2006 = vmatprep.subr.bf16.mxu0 0
        %2007 = vmatpush1.bf16.msra.mxu0 0
        %2008 = vmatprep.mubr.bf16.mxu0 0
        %2009 = vmatmul.mubr.bf16.gmra.mrb[0].mxu0 %v1974
        %v2010 = vpop.f32.mrb[0].mxu0
        %v2011 = vadd.f32 %v1946, %v2010
        %v2012 = vpop.f32.mrb[0].mxu0
        %v2013 = vpop.f32.mrb[0].mxu0
        %v2014 = vpop.f32.mrb[0].mxu0
        %2015 = vdwg.mxu0
        %v2016 = vld [vmem:[#allocation6] sm:$0xff]
        %2017 = vmax.xlane.f32.xlu0 %v2011
        %v2018 = vpop.xlane.xlu0 %2017
        %v2019 = vmax.f32 %v2016, %v2018
        %v2020 = vsub.f32 %v2016, %v2019
        %v2021 = vmul.f32 %v2020, 1.442695
        %v2022 = vpow.pop %v2021
        %2024 = vset.pattern.permute.xlu0 0
        %2025 = vperm.xlu0 %2024, %v2019
        %v2026 = vpop.permute.xlu0 %2025
        %v2028 = vsub.f32 %v2011, %v2026
        %v2029 = vmul.f32 %v2028, 1.442695
        %v2030 = vpow.pop %v2029
        %s2031 = smul.u32 %s42, 128
        %v2032 = vlaneseq
        %v2033 = vand.u32 %v2032, 127
        %v2034 = vstv %s2031
        %v2035 = vadd.s32 %v2034, %v2033
        %2036 = vset.pattern.permute.xlu0 0
        %2037 = vperm.xlu0 %2036, %v909
        %v2038 = vpop.permute.xlu0 %2037
        %vm2039 = vcmp.eq.s32.totalorder %v2035, %v2038
        %v2040 = vsel %vm2039, 1, 0
        %v2041 = vcvt.s32.f32 %v2040
        %v2042 = vld [vmem:[#allocation7] sm:$0xff]
        %v2043 = vmul.f32 %v2022, %v2042
        %2044 = vadd.xlane.f32.xlu0 %v2030
        %v2045 = vpop.xlane.xlu0 %2044
        %v2046 = vadd.f32 %v2043, %v2045
        %vm2047 = vcmask 7168
        %2048 = vst.msk [vmem:[#allocation7] sm:$0xff] %vm2047, %v2046
        %v2049 = vld [vmem:[#allocation8] sm:$0xff]
        %v2050 = vmul.f32 %v2022, %v2049
        %v2051 = vmul.f32 %v2030, %v2041
        %2052 = vadd.xlane.f32.xlu0 %v2051
        %v2053 = vpop.xlane.xlu0 %2052
        %v2054 = vadd.f32 %v2050, %v2053
        %2055 = vst.msk [vmem:[#allocation8] sm:$0xff] %vm2047, %v2054
        %2056 = vst.msk [vmem:[#allocation6] sm:$0xff] %vm2047, %v2019
        %p2057 = scmp.eq.s32.totalorder %s42, 1
        // Predicated region
        $region166: #{decode_one_step.1} parent=156 // pred_check
          %p2058 = pneg %p2057
        $region167: #{decode_one_step.1} parent=156 // pred_check_branch
          %2060 = sbr.rel (%p2058) target = $region169
        $region168: #{decode_one_step.1} parent=156 // pred_region
          %v2061 = vld [vmem:[#allocation3] sm:$0xff]
          %v2062 = vld [vmem:[#allocation8] sm:$0xff]
          %v2063 = vmul.f32 %v2061, %v2062
          %v2064 = vld [vmem:[#allocation7] sm:$0xff]
          %v2065 = vrcp.pop %v2064
          %v2066 = vmul.f32 %v2063, %v2065
          %v2067 = vld [vmem:[#allocation4] sm:$0xff]
          %v2068 = vadd.f32 %v2066, %v2067
          %2069 = vst.msk [vmem:[%s28] sm:$0xff] %vm2047, %v2068
          %v2070 = vld [vmem:[#allocation5] sm:$0xff]
          %2072 = vrot.lane.b32.xlu0 %v2070, 1
          %v2073 = vpop.permute.xlu0 %2072
          %vm2075 = vcmask 15368
          %2076 = vst.msk [vmem:[%s28] sm:$0xff] %vm2075, %v2073
        $region169: #{decode_one_step.1} parent=156 // pred_fallthru
          _
        // Predicated region
        $region170: #{decode_one_step.1} parent=156 // pred_check
          %p2077 = pneg %p590
        $region171: #{decode_one_step.1} parent=156 // pred_check_branch
          %2079 = sbr.rel (%p2077) target = $region173
        $region172: #{decode_one_step.1} parent=156 // pred_region
          _
        $region173: #{decode_one_step.1} parent=156 // pred_fallthru
          _
        // Predicated region
        $region174: #{decode_one_step.1} parent=156 // pred_check
          %p2080 = pneg %p611
        $region175: #{decode_one_step.1} parent=156 // pred_check_branch
          %2082 = sbr.rel (%p2080) target = $region177
        $region176: #{decode_one_step.1} parent=156 // pred_region
          _
        $region177: #{decode_one_step.1} parent=156 // pred_fallthru
          _
        // Predicated region
        $region178: #{decode_one_step.1} parent=156 // pred_check
          %p2083 = pneg %p632
        $region179: #{decode_one_step.1} parent=156 // pred_check_branch
          %2085 = sbr.rel (%p2083) target = $region181
        $region180: #{decode_one_step.1} parent=156 // pred_region
          _
        $region181: #{decode_one_step.1} parent=156 // pred_fallthru
          _
        // Predicated region
        $region182: #{decode_one_step.1} parent=156 // pred_check
          %p2086 = pneg %p653
        $region183: #{decode_one_step.1} parent=156 // pred_check_branch
          %2088 = sbr.rel (%p2086) target = $region185
        $region184: #{decode_one_step.1} parent=156 // pred_region
          _
        $region185: #{decode_one_step.1} parent=156 // pred_fallthru
          _
        // Predicated region
        $region186: #{decode_one_step.1} parent=156 // pred_check
          %p2089 = pneg %p590
        $region187: #{decode_one_step.1} parent=156 // pred_check_branch
          %2091 = sbr.rel (%p2089) target = $region189
        $region188: #{decode_one_step.1} parent=156 // pred_region
          _
        $region189: #{decode_one_step.1} parent=156 // pred_fallthru
          _
        // Predicated region
        $region190: #{decode_one_step.1} parent=156 // pred_check
          %p2092 = pneg %p611
        $region191: #{decode_one_step.1} parent=156 // pred_check_branch
          %2094 = sbr.rel (%p2092) target = $region193
        $region192: #{decode_one_step.1} parent=156 // pred_region
          _
        $region193: #{decode_one_step.1} parent=156 // pred_fallthru
          _
        // Predicated region
        $region194: #{decode_one_step.1} parent=156 // pred_check
          %p2095 = pneg %p632
        $region195: #{decode_one_step.1} parent=156 // pred_check_branch
          %2097 = sbr.rel (%p2095) target = $region197
        $region196: #{decode_one_step.1} parent=156 // pred_region
          _
        $region197: #{decode_one_step.1} parent=156 // pred_fallthru
          _
        // Predicated region
        $region198: #{decode_one_step.1} parent=156 // pred_check
          %p2098 = pneg %p653
        $region199: #{decode_one_step.1} parent=156 // pred_check_branch
          %2100 = sbr.rel (%p2098) target = $region201
        $region200: #{decode_one_step.1} parent=156 // pred_region
          _
        $region201: #{decode_one_step.1} parent=156 // pred_fallthru
          _
      $region157: #{decode_one_step.1} parent=5 // pred_fallthru
        _
      %p2101 = scmp.le.s32.totalorder 2, %s37
      // Predicated region
      $region202: #{decode_one_step.1} parent=5 // pred_check
        %p2102 = pneg %p2101
      $region203: #{decode_one_step.1} parent=5 // pred_check_branch
        %2104 = sbr.rel (%p2102) target = $region205
      $region204: #{decode_one_step.1} parent=5 // pred_region
        %s2105 = ssub.s32 %s37, 2
      $region205: #{decode_one_step.1} parent=5 // pred_fallthru
        _
    $region6: #{decode_one_step.1} parent=1 // loop_footer
      %s41 = sadd.s32 1, %s37
    $region7: #{decode_one_step.1} parent=1 // loop_footer_branch
      %36 = sbr.rel target = $region3
    $region8: #{decode_one_step.1} parent=1 // loop_exit
      _

</llo_original>
